<compile_context>
chip_gen: v7x
topology: tpu7x:2x2x1
jax: 0.10.0
libtpu: 0.0.40
codegen_flags: <defaults>
</compile_context>

<pallas_src>
import functools

import jax
import jax.numpy as jnp
import numpy as np
from jax.experimental import pallas as pl
from jax.experimental.pallas import tpu as pltpu

# ----------------------------- model dims -----------------------------------
L = 8            # sequence length
N = 2            # batch size
D_MODEL = 32     # embed dim (E)
N_HEADS = 4
HEAD_DIM = D_MODEL // N_HEADS
D_FF = 64        # dim_feedforward
LN_EPS = 1e-5

NEG_INF = -1e30  # additive mask value for cross-batch attention entries


def _layer_norm(y, gamma, beta):
    mu = jnp.mean(y, axis=-1, keepdims=True)
    var = jnp.mean((y - mu) ** 2, axis=-1, keepdims=True)
    return (y - mu) * jax.lax.rsqrt(var + LN_EPS) * gamma + beta


# ------------------------------ kernel ---------------------------------------
def encoder_layer_kernel(
    x_ref,        # (T, E)   T = L*N rows; row t -> (l = t // N, n = t % N)
    w_ref,        # (E, 3E + E + D_FF + D_FF)  fused [WqkvT | WoT | W1T | W2]
    vec_ref,      # (8, 3E)  stacked bias / gamma / beta rows (zero padded)
    o_ref,        # (T, E)
    *, num_heads, head_dim, d_model, d_ff, batch,
):
    e = d_model
    x = x_ref[...]
    t = x.shape[0]

    # --- in-kernel additive block-diagonal mask (no DMA'd mask input) --------
    row = jax.lax.broadcasted_iota(jnp.int32, (t, t), 0)
    col = jax.lax.broadcasted_iota(jnp.int32, (t, t), 1)
    mask = jnp.where((row % batch) == (col % batch), 0.0, NEG_INF).astype(jnp.float32)

    # --- static lane slices of the fused, VMEM-resident weight block ---------
    wqkv_t = w_ref[:, : 3 * e]                           # (E, 3E); Q cols pre-scaled
    wo_t = w_ref[:, 3 * e: 4 * e]                        # (E, E)
    w1_t = w_ref[:, 4 * e: 4 * e + d_ff]                 # (E, D_FF)
    w2 = w_ref[:, 4 * e + d_ff: 4 * e + 2 * d_ff]        # (E, D_FF) original layout

    # unpack the stacked small vectors
    b_qkv = vec_ref[0:1, : 3 * e]
    b1 = vec_ref[1:2, : d_ff]
    bo = vec_ref[2:3, : e]
    g1 = vec_ref[3:4, : e]
    be1 = vec_ref[4:5, : e]
    b2 = vec_ref[5:6, : e]
    g2 = vec_ref[6:7, : e]
    be2 = vec_ref[7:8, : e]

    # --- fused QKV projection: one MXU matmul for Q, K and V -----------------
    # (softmax scale already folded into the Q columns / bq host-side)
    qkv = jnp.dot(x, wqkv_t, preferred_element_type=jnp.float32) + b_qkv

    # --- multi-head attention -------------------------------------------------
    head_ctx = []
    for h in range(num_heads):
        lo = h * head_dim
        hi = lo + head_dim
        q_h = qkv[:, lo:hi]
        k_h = qkv[:, e + lo: e + hi]
        v_h = qkv[:, 2 * e + lo: 2 * e + hi]
        # s = q_h @ k_h^T expressed via dot_general contraction dims (no transpose op)
        s = jax.lax.dot_general(
            q_h, k_h, (((1,), (1,)), ((), ())),
            preferred_element_type=jnp.float32) + mask
        s = s - jnp.max(s, axis=-1, keepdims=True)
        p = jnp.exp(s)
        # exact reciprocal: approx=True risks the 1e-4 tolerance
        p = p * pl.reciprocal(jnp.sum(p, axis=-1, keepdims=True), approx=False)
        # TODO(synk): dropout on attention weights omitted (inference / eval mode)
        head_ctx.append(jnp.dot(p, v_h, preferred_element_type=jnp.float32))  # (T, Dh)

    # single K=E output projection instead of num_heads K=Dh matmuls
    ctx = jnp.concatenate(head_ctx, axis=-1)                                  # (T, E)
    attn = jnp.dot(ctx, wo_t, preferred_element_type=jnp.float32) + bo

    # --- residual + LayerNorm 1 ----------------------------------------------
    y = _layer_norm(x + attn, g1, be1)

    # --- FFN (relu) + residual + LayerNorm 2 ---------------------------------
    h1 = jnp.maximum(
        jnp.dot(y, w1_t, preferred_element_type=jnp.float32) + b1, 0.0)
    ffn = jax.lax.dot_general(
        h1, w2, (((1,), (1,)), ((), ())),
        preferred_element_type=jnp.float32) + b2                              # h1 @ W2^T
    o_ref[...] = _layer_norm(y + ffn, g2, be2)


# ------------------------------ wrapper ---------------------------------------
def transformer_encoder_layer(src_lne, params):
    """src_lne: (L, N, E) float32 (seq-first, as in the PyTorch module)."""
    l, n, e = src_lne.shape
    t = l * n
    # free reshape: row-major (L, N, E) -> (L*N, E); no transpose, no data movement
    x2d = src_lne.reshape(t, e)

    # fold the softmax scale into the Q projection (host-side constant fold)
    scale = 1.0 / (HEAD_DIM ** 0.5)
    w_qkv_t = jnp.concatenate(
        [params["wq"].T * scale, params["wk"].T, params["wv"].T], axis=1)  # (E, 3E)

    # one fused, lane-dense weight block: [WqkvT | WoT | W1T | W2] -> (E, 256)
    w_fused = jnp.concatenate(
        [w_qkv_t, params["wo"].T, params["w1"].T, params["w2"]], axis=1)

    # stack all small (1, .) vectors into one (8, 3E) input (zero padded rows)
    vec_w = 3 * e

    def pad_row(v):
        v = v.reshape(1, -1)
        return jnp.pad(v, ((0, 0), (0, vec_w - v.shape[1])))

    b_qkv = jnp.concatenate(
        [params["bq"] * scale, params["bk"], params["bv"]], axis=1)
    vecs = jnp.concatenate(
        [pad_row(b_qkv), pad_row(params["b1"]),
         pad_row(params["bo"]), pad_row(params["g1"]), pad_row(params["be1"]),
         pad_row(params["b2"]), pad_row(params["g2"]), pad_row(params["be2"])],
        axis=0)                                                            # (8, 3E)

    kernel = functools.partial(
        encoder_layer_kernel,
        num_heads=N_HEADS, head_dim=HEAD_DIM, d_model=e, d_ff=D_FF, batch=n)

    # single invocation, no grid: the whole ~40 KB working set lives in VMEM
    vmem = pl.BlockSpec(memory_space=pltpu.MemorySpace.VMEM)
    out2d = pl.pallas_call(
        kernel,
        out_shape=jax.ShapeDtypeStruct((t, e), jnp.float32),
        in_specs=[vmem] * 3,
        out_specs=vmem,
    )(x2d, w_fused, vecs)

    return out2d.reshape(l, n, e)


# --------------------------- pure-JAX reference --------------------------------
def reference(src_lne, params):
    x = jnp.transpose(src_lne, (1, 0, 2))    # (N, L, E)
    q = x @ params["wq"].T + params["bq"]
    k = x @ params["wk"].T + params["bk"]
    v = x @ params["wv"].T + params["bv"]

    def split(tns):  # (N, L, E) -> (N, H, L, Dh)
        return tns.reshape(N, L, N_HEADS, HEAD_DIM).transpose(0, 2, 1, 3)

    qh, kh, vh = split(q), split(k), split(v)
    s = jnp.einsum("nhld,nhsd->nhls", qh, kh) / (HEAD_DIM ** 0.5)
    p = jax.nn.softmax(s, axis=-1)
    a = jnp.einsum("nhls,nhsd->nhld", p, vh)
    a = a.transpose(0, 2, 1, 3).reshape(N, L, D_MODEL)
    a = a @ params["wo"].T + params["bo"]

    def ln(y, g, b):
        mu = jnp.mean(y, -1, keepdims=True)
        var = jnp.mean((y - mu) ** 2, -1, keepdims=True)
        return (y - mu) * jax.lax.rsqrt(var + LN_EPS) * g + b

    y = ln(x + a, params["g1"], params["be1"])
    h1 = jnp.maximum(y @ params["w1"].T + params["b1"], 0.0)
    ffn = h1 @ params["w2"].T + params["b2"]
    out = ln(y + ffn, params["g2"], params["be2"])
    return jnp.transpose(out, (1, 0, 2))


# ------------------------------ param init -------------------------------------
def init_params(key):
    ks = jax.random.split(key, 8)

    def xavier(k, shape):
        bound = float(np.sqrt(6.0 / (shape[0] + shape[1])))
        return jax.random.uniform(k, shape, jnp.float32, -bound, bound)

    def torch_linear(k, out_f, in_f):
        bound = 1.0 / float(np.sqrt(in_f))
        kw, kb = jax.random.split(k)
        w = jax.random.uniform(kw, (out_f, in_f), jnp.float32, -bound, bound)
        b = jax.random.uniform(kb, (1, out_f), jnp.float32, -bound, bound)
        return w, b

    wo, bo = torch_linear(ks[3], D_MODEL, D_MODEL)
    w1, b1 = torch_linear(ks[4], D_FF, D_MODEL)
    w2, b2 = torch_linear(ks[5], D_MODEL, D_FF)

    return dict(
        wq=xavier(ks[0], (D_MODEL, D_MODEL)), bq=jnp.zeros((1, D_MODEL), jnp.float32),
        wk=xavier(ks[1], (D_MODEL, D_MODEL)), bk=jnp.zeros((1, D_MODEL), jnp.float32),
        wv=xavier(ks[2], (D_MODEL, D_MODEL)), bv=jnp.zeros((1, D_MODEL), jnp.float32),
        wo=wo, bo=bo,
        g1=jnp.ones((1, D_MODEL), jnp.float32), be1=jnp.zeros((1, D_MODEL), jnp.float32),
        w1=w1, b1=b1, w2=w2, b2=b2,
        g2=jnp.ones((1, D_MODEL), jnp.float32), be2=jnp.zeros((1, D_MODEL), jnp.float32),
    )


# --------------------------------- main -----------------------------------------
if __name__ == "__main__":
    key = jax.random.PRNGKey(0)
    k_params, k_src = jax.random.split(key)
    params = init_params(k_params)
    src = jax.random.normal(k_src, (L, N, D_MODEL), jnp.float32)

    fwd = jax.jit(transformer_encoder_layer)
    out = jax.block_until_ready(fwd(src, params))

    ref = reference(src, params)
    np.testing.assert_allclose(np.asarray(out), np.asarray(ref), atol=1e-4, rtol=1e-4)

    print("KERNEL_OK")
</pallas_src>

<mosaic_0001>
module attributes {stable_mosaic.version = 11 : i64} {
  func.func @encoder_layer_kernel(%arg0: memref<16x32xf32, #tpu.memory_space<vmem>>, %arg1: memref<32x256xf32, #tpu.memory_space<vmem>>, %arg2: memref<8x96xf32, #tpu.memory_space<vmem>>, %arg3: memref<16x32xf32, #tpu.memory_space<vmem>>) attributes {dimension_semantics = [], scalar_prefetch = 0 : i64, scratch_operands = 0 : i64, tpu.core_type = #tpu.core_type<tc>} {
    %c0 = arith.constant 0 : index
    %c0_0 = arith.constant 0 : index
    %0 = vector.load %arg0[%c0, %c0_0] : memref<16x32xf32, #tpu.memory_space<vmem>>, vector<16x32xf32>
    %1 = tpu.iota {dimensions = array<i32: 0>} : vector<16x16xi32>
    %2 = tpu.iota {dimensions = array<i32: 1>} : vector<16x16xi32>
    %c2_i32 = arith.constant 2 : i32
    %c0_i32 = arith.constant 0 : i32
    %3 = arith.cmpi eq, %c2_i32, %c0_i32 : i32
    %c1_i32 = arith.constant 1 : i32
    %4 = arith.select %3, %c1_i32, %c2_i32 : i32
    %5 = vector.broadcast %4 : i32 to vector<16x16xi32>
    %6 = arith.remsi %1, %5 : vector<16x16xi32>
    %c0_i32_1 = arith.constant 0 : i32
    %7 = vector.broadcast %c0_i32_1 : i32 to vector<16x16xi32>
    %8 = arith.cmpi ne, %6, %7 : vector<16x16xi32>
    %c0_i32_2 = arith.constant 0 : i32
    %9 = vector.broadcast %c0_i32_2 : i32 to vector<16x16xi32>
    %10 = arith.cmpi slt, %6, %9 : vector<16x16xi32>
    %c0_i32_3 = arith.constant 0 : i32
    %11 = arith.cmpi slt, %4, %c0_i32_3 : i32
    %12 = vector.broadcast %11 : i1 to vector<16x16xi1>
    %13 = vector.broadcast %12 : vector<16x16xi1> to vector<16x16xi1>
    %14 = arith.xori %10, %13 : vector<16x16xi1>
    %15 = arith.andi %14, %8 : vector<16x16xi1>
    %16 = vector.broadcast %4 : i32 to vector<16x16xi32>
    %17 = arith.addi %6, %16 : vector<16x16xi32>
    %18 = arith.select %15, %17, %6 : vector<16x16xi1>, vector<16x16xi32>
    %c2_i32_4 = arith.constant 2 : i32
    %c0_i32_5 = arith.constant 0 : i32
    %19 = arith.cmpi eq, %c2_i32_4, %c0_i32_5 : i32
    %c1_i32_6 = arith.constant 1 : i32
    %20 = arith.select %19, %c1_i32_6, %c2_i32_4 : i32
    %21 = vector.broadcast %20 : i32 to vector<16x16xi32>
    %22 = arith.remsi %2, %21 : vector<16x16xi32>
    %c0_i32_7 = arith.constant 0 : i32
    %23 = vector.broadcast %c0_i32_7 : i32 to vector<16x16xi32>
    %24 = arith.cmpi ne, %22, %23 : vector<16x16xi32>
    %c0_i32_8 = arith.constant 0 : i32
    %25 = vector.broadcast %c0_i32_8 : i32 to vector<16x16xi32>
    %26 = arith.cmpi slt, %22, %25 : vector<16x16xi32>
    %c0_i32_9 = arith.constant 0 : i32
    %27 = arith.cmpi slt, %20, %c0_i32_9 : i32
    %28 = vector.broadcast %27 : i1 to vector<16x16xi1>
    %29 = vector.broadcast %28 : vector<16x16xi1> to vector<16x16xi1>
    %30 = arith.xori %26, %29 : vector<16x16xi1>
    %31 = arith.andi %30, %24 : vector<16x16xi1>
    %32 = vector.broadcast %20 : i32 to vector<16x16xi32>
    %33 = arith.addi %22, %32 : vector<16x16xi32>
    %34 = arith.select %31, %33, %22 : vector<16x16xi1>, vector<16x16xi32>
    %35 = arith.cmpi eq, %18, %34 : vector<16x16xi32>
    %cst = arith.constant 0.000000e+00 : f32
    %cst_10 = arith.constant -1.000000e+30 : f32
    %36 = vector.broadcast %cst : f32 to vector<16x16xf32>
    %37 = vector.broadcast %cst_10 : f32 to vector<16x16xf32>
    %38 = arith.select %35, %36, %37 : vector<16x16xi1>, vector<16x16xf32>
    %c0_11 = arith.constant 0 : index
    %c0_12 = arith.constant 0 : index
    %39 = vector.load %arg1[%c0_11, %c0_12] : memref<32x256xf32, #tpu.memory_space<vmem>>, vector<32x96xf32>
    %c0_13 = arith.constant 0 : index
    %c96 = arith.constant 96 : index
    %40 = vector.load %arg1[%c0_13, %c96] : memref<32x256xf32, #tpu.memory_space<vmem>>, vector<32x32xf32>
    %c0_14 = arith.constant 0 : index
    %c128 = arith.constant 128 : index
    %41 = vector.load %arg1[%c0_14, %c128] : memref<32x256xf32, #tpu.memory_space<vmem>>, vector<32x64xf32>
    %c0_15 = arith.constant 0 : index
    %c192 = arith.constant 192 : index
    %42 = vector.load %arg1[%c0_15, %c192] : memref<32x256xf32, #tpu.memory_space<vmem>>, vector<32x64xf32>
    %c0_16 = arith.constant 0 : index
    %c0_17 = arith.constant 0 : index
    %43 = vector.load %arg2[%c0_16, %c0_17] : memref<8x96xf32, #tpu.memory_space<vmem>>, vector<1x96xf32>
    %c1 = arith.constant 1 : index
    %c0_18 = arith.constant 0 : index
    %44 = vector.load %arg2[%c1, %c0_18] : memref<8x96xf32, #tpu.memory_space<vmem>>, vector<1x64xf32>
    %c2 = arith.constant 2 : index
    %c0_19 = arith.constant 0 : index
    %45 = vector.load %arg2[%c2, %c0_19] : memref<8x96xf32, #tpu.memory_space<vmem>>, vector<1x32xf32>
    %c3 = arith.constant 3 : index
    %c0_20 = arith.constant 0 : index
    %46 = vector.load %arg2[%c3, %c0_20] : memref<8x96xf32, #tpu.memory_space<vmem>>, vector<1x32xf32>
    %c4 = arith.constant 4 : index
    %c0_21 = arith.constant 0 : index
    %47 = vector.load %arg2[%c4, %c0_21] : memref<8x96xf32, #tpu.memory_space<vmem>>, vector<1x32xf32>
    %c5 = arith.constant 5 : index
    %c0_22 = arith.constant 0 : index
    %48 = vector.load %arg2[%c5, %c0_22] : memref<8x96xf32, #tpu.memory_space<vmem>>, vector<1x32xf32>
    %c6 = arith.constant 6 : index
    %c0_23 = arith.constant 0 : index
    %49 = vector.load %arg2[%c6, %c0_23] : memref<8x96xf32, #tpu.memory_space<vmem>>, vector<1x32xf32>
    %c7 = arith.constant 7 : index
    %c0_24 = arith.constant 0 : index
    %50 = vector.load %arg2[%c7, %c0_24] : memref<8x96xf32, #tpu.memory_space<vmem>>, vector<1x32xf32>
    %cst_25 = arith.constant dense<0.000000e+00> : vector<16x96xf32>
    %51 = tpu.matmul %0, %39, %cst_25 {dimension_numbers = #tpu.dot_dimension_numbers<[1], [0], [0], [1], [0, 0, 1, 1], [], []>} : vector<16x32xf32>, vector<32x96xf32>, vector<16x96xf32> -> vector<16x96xf32>
    %52 = vector.broadcast %43 : vector<1x96xf32> to vector<16x96xf32>
    %53 = arith.addf %51, %52 : vector<16x96xf32>
    %54 = vector.extract_strided_slice %53 {offsets = [0, 0], sizes = [16, 8], strides = [1, 1]} : vector<16x96xf32> to vector<16x8xf32>
    %55 = vector.extract_strided_slice %53 {offsets = [0, 32], sizes = [16, 8], strides = [1, 1]} : vector<16x96xf32> to vector<16x8xf32>
    %56 = vector.extract_strided_slice %53 {offsets = [0, 64], sizes = [16, 8], strides = [1, 1]} : vector<16x96xf32> to vector<16x8xf32>
    %cst_26 = arith.constant dense<0.000000e+00> : vector<16x16xf32>
    %57 = tpu.matmul %54, %55, %cst_26 {dimension_numbers = #tpu.dot_dimension_numbers<[1], [1], [0], [0], [0, 0, 1, 0], [], []>} : vector<16x8xf32>, vector<16x8xf32>, vector<16x16xf32> -> vector<16x16xf32>
    %58 = arith.addf %57, %38 : vector<16x16xf32>
    %cst_27 = arith.constant dense<0xFF800000> : vector<16xf32>
    %59 = vector.multi_reduction <maximumf>, %58, %cst_27 [1] : vector<16x16xf32> to vector<16xf32>
    %60 = vector.shape_cast %59 : vector<16xf32> to vector<16x1xf32>
    %61 = vector.broadcast %60 : vector<16x1xf32> to vector<16x16xf32>
    %62 = arith.subf %58, %61 : vector<16x16xf32>
    %63 = math.exp %62 : vector<16x16xf32>
    %cst_28 = arith.constant dense<0.000000e+00> : vector<16xf32>
    %64 = vector.multi_reduction <add>, %63, %cst_28 [1] : vector<16x16xf32> to vector<16xf32>
    %65 = vector.shape_cast %64 : vector<16xf32> to vector<16x1xf32>
    %66 = tpu.reciprocal %65 : vector<16x1xf32> -> vector<16x1xf32>
    %67 = vector.broadcast %66 : vector<16x1xf32> to vector<16x16xf32>
    %68 = arith.mulf %63, %67 : vector<16x16xf32>
    %cst_29 = arith.constant dense<0.000000e+00> : vector<16x8xf32>
    %69 = tpu.matmul %68, %56, %cst_29 {dimension_numbers = #tpu.dot_dimension_numbers<[1], [0], [0], [1], [0, 0, 1, 1], [], []>} : vector<16x16xf32>, vector<16x8xf32>, vector<16x8xf32> -> vector<16x8xf32>
    %70 = vector.extract_strided_slice %53 {offsets = [0, 8], sizes = [16, 8], strides = [1, 1]} : vector<16x96xf32> to vector<16x8xf32>
    %71 = vector.extract_strided_slice %53 {offsets = [0, 40], sizes = [16, 8], strides = [1, 1]} : vector<16x96xf32> to vector<16x8xf32>
    %72 = vector.extract_strided_slice %53 {offsets = [0, 72], sizes = [16, 8], strides = [1, 1]} : vector<16x96xf32> to vector<16x8xf32>
    %cst_30 = arith.constant dense<0.000000e+00> : vector<16x16xf32>
    %73 = tpu.matmul %70, %71, %cst_30 {dimension_numbers = #tpu.dot_dimension_numbers<[1], [1], [0], [0], [0, 0, 1, 0], [], []>} : vector<16x8xf32>, vector<16x8xf32>, vector<16x16xf32> -> vector<16x16xf32>
    %74 = arith.addf %73, %38 : vector<16x16xf32>
    %cst_31 = arith.constant dense<0xFF800000> : vector<16xf32>
    %75 = vector.multi_reduction <maximumf>, %74, %cst_31 [1] : vector<16x16xf32> to vector<16xf32>
    %76 = vector.shape_cast %75 : vector<16xf32> to vector<16x1xf32>
    %77 = vector.broadcast %76 : vector<16x1xf32> to vector<16x16xf32>
    %78 = arith.subf %74, %77 : vector<16x16xf32>
    %79 = math.exp %78 : vector<16x16xf32>
    %cst_32 = arith.constant dense<0.000000e+00> : vector<16xf32>
    %80 = vector.multi_reduction <add>, %79, %cst_32 [1] : vector<16x16xf32> to vector<16xf32>
    %81 = vector.shape_cast %80 : vector<16xf32> to vector<16x1xf32>
    %82 = tpu.reciprocal %81 : vector<16x1xf32> -> vector<16x1xf32>
    %83 = vector.broadcast %82 : vector<16x1xf32> to vector<16x16xf32>
    %84 = arith.mulf %79, %83 : vector<16x16xf32>
    %cst_33 = arith.constant dense<0.000000e+00> : vector<16x8xf32>
    %85 = tpu.matmul %84, %72, %cst_33 {dimension_numbers = #tpu.dot_dimension_numbers<[1], [0], [0], [1], [0, 0, 1, 1], [], []>} : vector<16x16xf32>, vector<16x8xf32>, vector<16x8xf32> -> vector<16x8xf32>
    %86 = vector.extract_strided_slice %53 {offsets = [0, 16], sizes = [16, 8], strides = [1, 1]} : vector<16x96xf32> to vector<16x8xf32>
    %87 = vector.extract_strided_slice %53 {offsets = [0, 48], sizes = [16, 8], strides = [1, 1]} : vector<16x96xf32> to vector<16x8xf32>
    %88 = vector.extract_strided_slice %53 {offsets = [0, 80], sizes = [16, 8], strides = [1, 1]} : vector<16x96xf32> to vector<16x8xf32>
    %cst_34 = arith.constant dense<0.000000e+00> : vector<16x16xf32>
    %89 = tpu.matmul %86, %87, %cst_34 {dimension_numbers = #tpu.dot_dimension_numbers<[1], [1], [0], [0], [0, 0, 1, 0], [], []>} : vector<16x8xf32>, vector<16x8xf32>, vector<16x16xf32> -> vector<16x16xf32>
    %90 = arith.addf %89, %38 : vector<16x16xf32>
    %cst_35 = arith.constant dense<0xFF800000> : vector<16xf32>
    %91 = vector.multi_reduction <maximumf>, %90, %cst_35 [1] : vector<16x16xf32> to vector<16xf32>
    %92 = vector.shape_cast %91 : vector<16xf32> to vector<16x1xf32>
    %93 = vector.broadcast %92 : vector<16x1xf32> to vector<16x16xf32>
    %94 = arith.subf %90, %93 : vector<16x16xf32>
    %95 = math.exp %94 : vector<16x16xf32>
    %cst_36 = arith.constant dense<0.000000e+00> : vector<16xf32>
    %96 = vector.multi_reduction <add>, %95, %cst_36 [1] : vector<16x16xf32> to vector<16xf32>
    %97 = vector.shape_cast %96 : vector<16xf32> to vector<16x1xf32>
    %98 = tpu.reciprocal %97 : vector<16x1xf32> -> vector<16x1xf32>
    %99 = vector.broadcast %98 : vector<16x1xf32> to vector<16x16xf32>
    %100 = arith.mulf %95, %99 : vector<16x16xf32>
    %cst_37 = arith.constant dense<0.000000e+00> : vector<16x8xf32>
    %101 = tpu.matmul %100, %88, %cst_37 {dimension_numbers = #tpu.dot_dimension_numbers<[1], [0], [0], [1], [0, 0, 1, 1], [], []>} : vector<16x16xf32>, vector<16x8xf32>, vector<16x8xf32> -> vector<16x8xf32>
    %102 = vector.extract_strided_slice %53 {offsets = [0, 24], sizes = [16, 8], strides = [1, 1]} : vector<16x96xf32> to vector<16x8xf32>
    %103 = vector.extract_strided_slice %53 {offsets = [0, 56], sizes = [16, 8], strides = [1, 1]} : vector<16x96xf32> to vector<16x8xf32>
    %104 = vector.extract_strided_slice %53 {offsets = [0, 88], sizes = [16, 8], strides = [1, 1]} : vector<16x96xf32> to vector<16x8xf32>
    %cst_38 = arith.constant dense<0.000000e+00> : vector<16x16xf32>
    %105 = tpu.matmul %102, %103, %cst_38 {dimension_numbers = #tpu.dot_dimension_numbers<[1], [1], [0], [0], [0, 0, 1, 0], [], []>} : vector<16x8xf32>, vector<16x8xf32>, vector<16x16xf32> -> vector<16x16xf32>
    %106 = arith.addf %105, %38 : vector<16x16xf32>
    %cst_39 = arith.constant dense<0xFF800000> : vector<16xf32>
    %107 = vector.multi_reduction <maximumf>, %106, %cst_39 [1] : vector<16x16xf32> to vector<16xf32>
    %108 = vector.shape_cast %107 : vector<16xf32> to vector<16x1xf32>
    %109 = vector.broadcast %108 : vector<16x1xf32> to vector<16x16xf32>
    %110 = arith.subf %106, %109 : vector<16x16xf32>
    %111 = math.exp %110 : vector<16x16xf32>
    %cst_40 = arith.constant dense<0.000000e+00> : vector<16xf32>
    %112 = vector.multi_reduction <add>, %111, %cst_40 [1] : vector<16x16xf32> to vector<16xf32>
    %113 = vector.shape_cast %112 : vector<16xf32> to vector<16x1xf32>
    %114 = tpu.reciprocal %113 : vector<16x1xf32> -> vector<16x1xf32>
    %115 = vector.broadcast %114 : vector<16x1xf32> to vector<16x16xf32>
    %116 = arith.mulf %111, %115 : vector<16x16xf32>
    %cst_41 = arith.constant dense<0.000000e+00> : vector<16x8xf32>
    %117 = tpu.matmul %116, %104, %cst_41 {dimension_numbers = #tpu.dot_dimension_numbers<[1], [0], [0], [1], [0, 0, 1, 1], [], []>} : vector<16x16xf32>, vector<16x8xf32>, vector<16x8xf32> -> vector<16x8xf32>
    %118 = tpu.concatenate %69, %85, %101, %117 in 1 : vector<16x8xf32>, vector<16x8xf32>, vector<16x8xf32>, vector<16x8xf32> -> vector<16x32xf32>
    %cst_42 = arith.constant dense<0.000000e+00> : vector<16x32xf32>
    %119 = tpu.matmul %118, %40, %cst_42 {dimension_numbers = #tpu.dot_dimension_numbers<[1], [0], [0], [1], [0, 0, 1, 1], [], []>} : vector<16x32xf32>, vector<32x32xf32>, vector<16x32xf32> -> vector<16x32xf32>
    %120 = vector.broadcast %45 : vector<1x32xf32> to vector<16x32xf32>
    %121 = arith.addf %119, %120 : vector<16x32xf32>
    %122 = arith.addf %0, %121 : vector<16x32xf32>
    %cst_43 = arith.constant dense<0.000000e+00> : vector<16xf32>
    %123 = vector.multi_reduction <add>, %122, %cst_43 [1] : vector<16x32xf32> to vector<16xf32>
    %124 = vector.shape_cast %123 : vector<16xf32> to vector<16x1xf32>
    %cst_44 = arith.constant 3.200000e+01 : f32
    %125 = vector.broadcast %cst_44 : f32 to vector<16x1xf32>
    %126 = arith.divf %124, %125 : vector<16x1xf32>
    %127 = vector.broadcast %126 : vector<16x1xf32> to vector<16x32xf32>
    %128 = arith.subf %122, %127 : vector<16x32xf32>
    %129 = arith.mulf %128, %128 : vector<16x32xf32>
    %cst_45 = arith.constant dense<0.000000e+00> : vector<16xf32>
    %130 = vector.multi_reduction <add>, %129, %cst_45 [1] : vector<16x32xf32> to vector<16xf32>
    %131 = vector.shape_cast %130 : vector<16xf32> to vector<16x1xf32>
    %cst_46 = arith.constant 3.200000e+01 : f32
    %132 = vector.broadcast %cst_46 : f32 to vector<16x1xf32>
    %133 = arith.divf %131, %132 : vector<16x1xf32>
    %134 = vector.broadcast %126 : vector<16x1xf32> to vector<16x32xf32>
    %135 = arith.subf %122, %134 : vector<16x32xf32>
    %cst_47 = arith.constant 9.99999974E-6 : f32
    %136 = vector.broadcast %cst_47 : f32 to vector<16x1xf32>
    %137 = arith.addf %133, %136 : vector<16x1xf32>
    %138 = math.rsqrt %137 : vector<16x1xf32>
    %139 = vector.broadcast %138 : vector<16x1xf32> to vector<16x32xf32>
    %140 = arith.mulf %135, %139 : vector<16x32xf32>
    %141 = vector.broadcast %46 : vector<1x32xf32> to vector<16x32xf32>
    %142 = arith.mulf %140, %141 : vector<16x32xf32>
    %143 = vector.broadcast %47 : vector<1x32xf32> to vector<16x32xf32>
    %144 = arith.addf %142, %143 : vector<16x32xf32>
    %cst_48 = arith.constant dense<0.000000e+00> : vector<16x64xf32>
    %145 = tpu.matmul %144, %41, %cst_48 {dimension_numbers = #tpu.dot_dimension_numbers<[1], [0], [0], [1], [0, 0, 1, 1], [], []>} : vector<16x32xf32>, vector<32x64xf32>, vector<16x64xf32> -> vector<16x64xf32>
    %146 = vector.broadcast %44 : vector<1x64xf32> to vector<16x64xf32>
    %147 = arith.addf %145, %146 : vector<16x64xf32>
    %cst_49 = arith.constant 0.000000e+00 : f32
    %148 = vector.broadcast %cst_49 : f32 to vector<16x64xf32>
    %149 = arith.maximumf %147, %148 : vector<16x64xf32>
    %cst_50 = arith.constant dense<0.000000e+00> : vector<16x32xf32>
    %150 = tpu.matmul %149, %42, %cst_50 {dimension_numbers = #tpu.dot_dimension_numbers<[1], [1], [0], [0], [0, 0, 1, 0], [], []>} : vector<16x64xf32>, vector<32x64xf32>, vector<16x32xf32> -> vector<16x32xf32>
    %151 = vector.broadcast %48 : vector<1x32xf32> to vector<16x32xf32>
    %152 = arith.addf %150, %151 : vector<16x32xf32>
    %153 = arith.addf %144, %152 : vector<16x32xf32>
    %cst_51 = arith.constant dense<0.000000e+00> : vector<16xf32>
    %154 = vector.multi_reduction <add>, %153, %cst_51 [1] : vector<16x32xf32> to vector<16xf32>
    %155 = vector.shape_cast %154 : vector<16xf32> to vector<16x1xf32>
    %cst_52 = arith.constant 3.200000e+01 : f32
    %156 = vector.broadcast %cst_52 : f32 to vector<16x1xf32>
    %157 = arith.divf %155, %156 : vector<16x1xf32>
    %158 = vector.broadcast %157 : vector<16x1xf32> to vector<16x32xf32>
    %159 = arith.subf %153, %158 : vector<16x32xf32>
    %160 = arith.mulf %159, %159 : vector<16x32xf32>
    %cst_53 = arith.constant dense<0.000000e+00> : vector<16xf32>
    %161 = vector.multi_reduction <add>, %160, %cst_53 [1] : vector<16x32xf32> to vector<16xf32>
    %162 = vector.shape_cast %161 : vector<16xf32> to vector<16x1xf32>
    %cst_54 = arith.constant 3.200000e+01 : f32
    %163 = vector.broadcast %cst_54 : f32 to vector<16x1xf32>
    %164 = arith.divf %162, %163 : vector<16x1xf32>
    %165 = vector.broadcast %157 : vector<16x1xf32> to vector<16x32xf32>
    %166 = arith.subf %153, %165 : vector<16x32xf32>
    %cst_55 = arith.constant 9.99999974E-6 : f32
    %167 = vector.broadcast %cst_55 : f32 to vector<16x1xf32>
    %168 = arith.addf %164, %167 : vector<16x1xf32>
    %169 = math.rsqrt %168 : vector<16x1xf32>
    %170 = vector.broadcast %169 : vector<16x1xf32> to vector<16x32xf32>
    %171 = arith.mulf %166, %170 : vector<16x32xf32>
    %172 = vector.broadcast %49 : vector<1x32xf32> to vector<16x32xf32>
    %173 = arith.mulf %171, %172 : vector<16x32xf32>
    %174 = vector.broadcast %50 : vector<1x32xf32> to vector<16x32xf32>
    %175 = arith.addf %173, %174 : vector<16x32xf32>
    %c0_56 = arith.constant 0 : index
    %c0_57 = arith.constant 0 : index
    %176 = vector.load %arg3[%c0_56, %c0_57] : memref<16x32xf32, #tpu.memory_space<vmem>>, vector<16x32xf32>
    tpu.vector_store %arg3[%c0_56, %c0_57], %175 {strides = array<i32>} : memref<16x32xf32, #tpu.memory_space<vmem>>, vector<16x32xf32>,
    return
  }
}

</mosaic_0001>

<llo_original>
// kernel: transformer_encoder_layer.1
$region0: #{transformer_encoder_layer.1}
  #allocation0 [shape = 'u32[]', space=smem, size = 0x4, offset = 0x4, fixed_abs, tag = 'smem constant byte address 0x4 - core index']
  #allocation1 [shape = 'u32[144,128]{1,0:T(1,128)}', space=vmem, size = 0x12000, scoped, tag = 'internal scratch']
  %s0 = inlined_call_operand.vmem [shape: f32[16,32], index: 0, kind: input, shape index: {}]
  %s1 = inlined_call_operand.vmem [shape: f32[32,256], index: 1, kind: input, shape index: {}]
  %s2 = inlined_call_operand.vmem [shape: f32[8,96], index: 2, kind: input, shape index: {}]
  %s3 = inlined_call_operand.hbm [shape: f32[16,32], index: 3, kind: output, shape index: {}]
  %s4 = sld [smem:[#allocation0]]
  $region22: #{transformer_encoder_layer.1} parent=0
    _
  %s6 = ssub.s32 1, %s4
  %s7 = scalar_select 0, %s6, %s4
  $region1: #{transformer_encoder_layer.1} parent=0
    #allocation2 [shape = 'u8[8192]{0}', space=vmem, size = 0x2000, scoped, tag = 'output window, operand 0, single buffered']
    #allocation3 [shape = 's32[1]{0}', space=sflag, size = 0x4, scoped, tag = 'scoped memory for transformer_encoder_layer.1']
    %8 = vsyncpa [#allocation3], 0
    // Predicated region
    $region2: #{transformer_encoder_layer.1} parent=1 // pred_check
      _
    $region3: #{transformer_encoder_layer.1} parent=1 // pred_check_branch
      %10 = sbr.rel (0) target = $region5
    $region4: #{transformer_encoder_layer.1} parent=1 // pred_region
      _
    $region5: #{transformer_encoder_layer.1} parent=1 // pred_fallthru
      _
    // Predicated region
    $region6: #{transformer_encoder_layer.1} parent=1 // pred_check
      _
    $region7: #{transformer_encoder_layer.1} parent=1 // pred_check_branch
      %12 = sbr.rel (0) target = $region9
    $region8: #{transformer_encoder_layer.1} parent=1 // pred_region
      _
    $region9: #{transformer_encoder_layer.1} parent=1 // pred_fallthru
      _
    // Predicated region
    $region10: #{transformer_encoder_layer.1} parent=1 // pred_check
      _
    $region11: #{transformer_encoder_layer.1} parent=1 // pred_check_branch
      %14 = sbr.rel (0) target = $region13
    $region12: #{transformer_encoder_layer.1} parent=1 // pred_region
      _
    $region13: #{transformer_encoder_layer.1} parent=1 // pred_fallthru
      _
    %v15 = vld [vmem:[%s0] sm:$0xff]
    %v16 = vld [vmem:[%s0 + $0x8] sm:$0xff]
    %v17 = vlaneseq
    %v18 = vshrl.u32 %v17, 7
    %v19 = vadd.s32 %v18, 8
    %v20 = vlaneseq
    %v21 = vand.u32 %v20, 127
    %vm22 = vcmp.lt.s32.totalorder %v18, 0
    %v23 = vsub.s32 0, %v18
    %v24 = vsel %vm22, %v23, %v18
    %v25 = vshrl.u32 %v24, 1
    %v26 = vand.u32 %v24, 1
    %v27 = vsub.s32 0, %v26
    %v28 = vsel %vm22, %v27, %v26
    %vm29 = vcmp.lt.s32.totalorder %v19, 0
    %v30 = vsub.s32 0, %v19
    %v31 = vsel %vm29, %v30, %v19
    %v32 = vshrl.u32 %v31, 1
    %v33 = vand.u32 %v31, 1
    %v34 = vsub.s32 0, %v33
    %v35 = vsel %vm29, %v34, %v33
    %vm36 = vcmp.ne.s32.totalorder %v28, 0
    %vm37 = vcmp.ne.s32.totalorder %v35, 0
    %vm38 = vcmp.lt.s32.totalorder %v28, 0
    %vm39 = vcmp.lt.s32.totalorder %v35, 0
    %vm40 = vmand %vm38, %vm36
    %vm41 = vmand %vm39, %vm37
    %v42 = vadd.s32 %v28, 2
    %v43 = vadd.s32 %v35, 2
    %v44 = vsel %vm40, %v42, %v28
    %v45 = vsel %vm41, %v43, %v35
    %vm46 = vcmp.lt.s32.totalorder %v21, 0
    %v47 = vsub.s32 0, %v21
    %v48 = vsel %vm46, %v47, %v21
    %v49 = vshrl.u32 %v48, 1
    %v50 = vand.u32 %v48, 1
    %v51 = vsub.s32 0, %v50
    %v52 = vsel %vm46, %v51, %v50
    %vm53 = vcmp.ne.s32.totalorder %v52, 0
    %vm54 = vcmp.lt.s32.totalorder %v52, 0
    %vm55 = vmand %vm54, %vm53
    %v56 = vadd.s32 %v52, 2
    %v57 = vsel %vm55, %v56, %v52
    %vm58 = vcmp.eq.s32.totalorder %v44, %v57
    %vm59 = vcmp.eq.s32.totalorder %v45, %v57
    %v60 = vsel %vm58, 0.0, -1e+30
    %v61 = vsel %vm59, 0.0, -1e+30
    %v62 = vld [vmem:[%s1] sm:$0xff]
    %v63 = vld [vmem:[%s1 + $0x10] sm:$0xff]
    %v64 = vld [vmem:[%s1 + $0x20] sm:$0xff]
    %v65 = vld [vmem:[%s1 + $0x30] sm:$0xff]
    %v66 = vld [vmem:[%s1 + $0x8] sm:$0xff]
    %v67 = vld [vmem:[%s1 + $0x18] sm:$0xff]
    %v68 = vld [vmem:[%s1 + $0x28] sm:$0xff]
    %v69 = vld [vmem:[%s1 + $0x38] sm:$0xff]
    %v70 = vld [vmem:[%s2] sm:$0x1]
    %v71 = vld [vmem:[%s2 + $0x1] sm:$0x1]
    %v72 = vld [vmem:[%s2 + $0x2] sm:$0x1]
    %v73 = vld [vmem:[%s2 + $0x3] sm:$0x1]
    %v74 = vld [vmem:[%s2 + $0x4] sm:$0x1]
    %v75 = vld [vmem:[%s2 + $0x5] sm:$0x1]
    %v76 = vld [vmem:[%s2 + $0x6] sm:$0x1]
    %v77 = vld [vmem:[%s2 + $0x7] sm:$0x1]
    %v78 = vlaneseq
    %v79 = vshrl.u32 %v78, 7
    %v80 = vsub.s32 0, %v79
    %v81 = vrot.slane %v70, %v80
    %vm82 = vcmask 261120
    %v84 = vsel %vm82, %v15, 0
    %v87 = vsel %vm82, %v16, 0
    %89 = vmatprep.subr.mxu0 0.0
    %90 = vmatpush1.msra.mxu0 %v62
    %91 = vmatprep.subr.mxu0 0.0
    %92 = vmatpush1.msra.mxu0 %v63
    %93 = vmatprep.subr.mxu0 0.0
    %94 = vmatpush1.msra.mxu0 %v64
    %95 = vmatprep.subr.mxu0 0.0
    %96 = vmatpush1.msra.mxu0 %v65
    %97 = vmatprep.subr.mxu0 0.0
    %98 = vmatpush1.msra.mxu0 0.0
    %99 = vmatprep.subr.mxu0 0.0
    %100 = vmatpush1.msra.mxu0 0.0
    %101 = vmatprep.subr.mxu0 0.0
    %102 = vmatpush1.msra.mxu0 0.0
    %103 = vmatprep.subr.mxu0 0.0
    %104 = vmatpush1.msra.mxu0 0.0
    %105 = vmatprep.subr.mxu0 0.0
    %106 = vmatpush1.msra.mxu0 0.0
    %107 = vmatprep.subr.mxu0 0.0
    %108 = vmatpush1.msra.mxu0 0.0
    %109 = vmatprep.subr.mxu0 0.0
    %110 = vmatpush1.msra.mxu0 0.0
    %111 = vmatprep.subr.mxu0 0.0
    %112 = vmatpush1.msra.mxu0 0.0
    %113 = vmatprep.subr.mxu0 0.0
    %114 = vmatpush1.msra.mxu0 0.0
    %115 = vmatprep.subr.mxu0 0.0
    %116 = vmatpush1.msra.mxu0 0.0
    %117 = vmatprep.subr.mxu0 0.0
    %118 = vmatpush1.msra.mxu0 0.0
    %119 = vmatprep.subr.mxu0 0.0
    %120 = vmatpush1.msra.mxu0 0.0
    %121 = vmatprep.subr.mxu0 0.0
    %122 = vmatpush1.msra.mxu0 0.0
    %123 = vmatprep.subr.mxu0 0.0
    %124 = vmatpush1.msra.mxu0 0.0
    %125 = vmatprep.subr.mxu0 0.0
    %126 = vmatpush1.msra.mxu0 0.0
    %127 = vmatprep.subr.mxu0 0.0
    %128 = vmatpush1.msra.mxu0 0.0
    %129 = vmatprep.subr.mxu0 0.0
    %130 = vmatpush1.msra.mxu0 0.0
    %131 = vmatprep.subr.mxu0 0.0
    %132 = vmatpush1.msra.mxu0 0.0
    %133 = vmatprep.subr.mxu0 0.0
    %134 = vmatpush1.msra.mxu0 0.0
    %135 = vmatprep.subr.mxu0 0.0
    %136 = vmatpush1.msra.mxu0 0.0
    %137 = vmatprep.subr.mxu0 0.0
    %138 = vmatpush1.msra.mxu0 0.0
    %139 = vmatprep.subr.mxu0 0.0
    %140 = vmatpush1.msra.mxu0 0.0
    %141 = vmatprep.subr.mxu0 0.0
    %142 = vmatpush1.msra.mxu0 0.0
    %143 = vmatprep.subr.mxu0 0.0
    %144 = vmatpush1.msra.mxu0 0.0
    %145 = vmatprep.subr.mxu0 0.0
    %146 = vmatpush1.msra.mxu0 0.0
    %147 = vmatprep.subr.mxu0 0.0
    %148 = vmatpush1.msra.mxu0 0.0
    %149 = vmatprep.subr.mxu0 0.0
    %150 = vmatpush1.msra.mxu0 0.0
    %151 = vmatprep.subr.mxu0 0.0
    %152 = vmatpush1.msra.mxu0 0.0
    %153 = vmatprep.mubr.f32.mxu0 0.0
    %154 = vmatmul.mubr.f32.gmra.mrb[0].mxu0 %v84
    %v155 = vpop.f32.mrb[0].mxu0
    %v156 = vadd.f32 %v81, %v155
    %v157 = vpop.f32.mrb[0].mxu0
    %158 = vmatprep.mubr.f32.mxu0 0.0
    %159 = vmatmul.mubr.f32.gmra.mrb[0].mxu0 %v87
    %v160 = vpop.f32.mrb[0].mxu0
    %v161 = vadd.f32 %v81, %v160
    %v162 = vpop.f32.mrb[0].mxu0
    %163 = vdwg.mxu0
    %166 = vrot.lane.b32.xlu0 %v156, 96
    %v167 = vpop.permute.xlu0 %166
    %168 = vrot.lane.b32.xlu0 %v161, 96
    %v169 = vpop.permute.xlu0 %168
    %vm170 = vcmask 64512
    %v171 = vsel %vm170, %v156, 0
    %v173 = vsel %vm170, %v161, 0
    %v175 = vsel %vm170, %v167, 0
    %v177 = vsel %vm170, %v169, 0
    %179 = vmatprep.subr.mxu0 0.0
    %180 = vmatpush1.xpose.msra.mxu0 %v175
    %181 = vmatprep.subr.mxu0 0.0
    %182 = vmatpush1.xpose.msra.mxu0 %v177
    %183 = vmatprep.subr.mxu0 0.0
    %184 = vmatpush1.xpose.msra.mxu0 0.0
    %185 = vmatprep.subr.mxu0 0.0
    %186 = vmatpush1.xpose.msra.mxu0 0.0
    %187 = vmatprep.subr.mxu0 0.0
    %188 = vmatpush1.xpose.msra.mxu0 0.0
    %189 = vmatprep.subr.mxu0 0.0
    %190 = vmatpush1.xpose.msra.mxu0 0.0
    %191 = vmatprep.subr.mxu0 0.0
    %192 = vmatpush1.xpose.msra.mxu0 0.0
    %193 = vmatprep.subr.mxu0 0.0
    %194 = vmatpush1.xpose.msra.mxu0 0.0
    %195 = vmatprep.subr.mxu0 0.0
    %196 = vmatpush1.xpose.msra.mxu0 0.0
    %197 = vmatprep.subr.mxu0 0.0
    %198 = vmatpush1.xpose.msra.mxu0 0.0
    %199 = vmatprep.subr.mxu0 0.0
    %200 = vmatpush1.xpose.msra.mxu0 0.0
    %201 = vmatprep.subr.mxu0 0.0
    %202 = vmatpush1.xpose.msra.mxu0 0.0
    %203 = vmatprep.subr.mxu0 0.0
    %204 = vmatpush1.xpose.msra.mxu0 0.0
    %205 = vmatprep.subr.mxu0 0.0
    %206 = vmatpush1.xpose.msra.mxu0 0.0
    %207 = vmatprep.subr.mxu0 0.0
    %208 = vmatpush1.xpose.msra.mxu0 0.0
    %209 = vmatprep.subr.mxu0 0.0
    %210 = vmatpush1.xpose.msra.mxu0 0.0
    %211 = vmatprep.subr.mxu0 0.0
    %212 = vmatpush1.xpose.msra.mxu0 0.0
    %213 = vmatprep.subr.mxu0 0.0
    %214 = vmatpush1.xpose.msra.mxu0 0.0
    %215 = vmatprep.subr.mxu0 0.0
    %216 = vmatpush1.xpose.msra.mxu0 0.0
    %217 = vmatprep.subr.mxu0 0.0
    %218 = vmatpush1.xpose.msra.mxu0 0.0
    %219 = vmatprep.subr.mxu0 0.0
    %220 = vmatpush1.xpose.msra.mxu0 0.0
    %221 = vmatprep.subr.mxu0 0.0
    %222 = vmatpush1.xpose.msra.mxu0 0.0
    %223 = vmatprep.subr.mxu0 0.0
    %224 = vmatpush1.xpose.msra.mxu0 0.0
    %225 = vmatprep.subr.mxu0 0.0
    %226 = vmatpush1.xpose.msra.mxu0 0.0
    %227 = vmatprep.subr.mxu0 0.0
    %228 = vmatpush1.xpose.msra.mxu0 0.0
    %229 = vmatprep.subr.mxu0 0.0
    %230 = vmatpush1.xpose.msra.mxu0 0.0
    %231 = vmatprep.subr.mxu0 0.0
    %232 = vmatpush1.xpose.msra.mxu0 0.0
    %233 = vmatprep.subr.mxu0 0.0
    %234 = vmatpush1.xpose.msra.mxu0 0.0
    %235 = vmatprep.subr.mxu0 0.0
    %236 = vmatpush1.xpose.msra.mxu0 0.0
    %237 = vmatprep.subr.mxu0 0.0
    %238 = vmatpush1.xpose.msra.mxu0 0.0
    %239 = vmatprep.subr.mxu0 0.0
    %240 = vmatpush1.xpose.msra.mxu0 0.0
    %241 = vmatprep.subr.mxu0 0.0
    %242 = vmatpush1.xpose.msra.mxu0 0.0
    %243 = vmatprep.mubr.f32.mxu0 0.0
    %244 = vmatmul.mubr.f32.gmra.mrb[0].mxu0 %v171
    %v245 = vpop.f32.mrb[0].mxu0
    %v246 = vadd.f32 %v60, %v245
    %v247 = vpop.f32.mrb[0].mxu0
    %248 = vmatprep.mubr.f32.mxu0 0.0
    %249 = vmatmul.mubr.f32.gmra.mrb[0].mxu0 %v173
    %v250 = vpop.f32.mrb[0].mxu0
    %v251 = vadd.f32 %v61, %v250
    %v252 = vpop.f32.mrb[0].mxu0
    %253 = vdwg.mxu0
    %vm254 = vcmask 130048
    %v255 = vsel %vm254, %v246, -inf
    %256 = vmax.xlane.f32.xlu0 %v255
    %v257 = vpop.xlane.xlu0 %256
    %v258 = vsel %vm254, %v251, -inf
    %259 = vmax.xlane.f32.xlu0 %v258
    %v260 = vpop.xlane.xlu0 %259
    %v261 = vsub.f32 %v246, %v257
    %v262 = vsub.f32 %v251, %v260
    %v263 = vmul.f32 %v261, 1.442695
    %v264 = vpow.pop %v263
    %v265 = vmul.f32 %v262, 1.442695
    %v266 = vpow.pop %v265
    %v267 = vsel %vm254, %v264, 0.0
    %268 = vadd.xlane.f32.xlu0 %v267
    %v269 = vpop.xlane.xlu0 %268
    %v270 = vsel %vm254, %v266, 0.0
    %271 = vadd.xlane.f32.xlu0 %v270
    %v272 = vpop.xlane.xlu0 %271
    %v273 = vrcp.pop %v269
    %v274 = vrcp.pop %v272
    %v275 = vmul.f32 %v264, %v273
    %v276 = vmul.f32 %v266, %v274
    %277 = vrot.lane.b32.xlu0 %v156, 64
    %v278 = vpop.permute.xlu0 %277
    %279 = vrot.lane.b32.xlu0 %v161, 64
    %v280 = vpop.permute.xlu0 %279
    %v284 = vsel %vm254, %v275, 0
    %v287 = vsel %vm254, %v276, 0
    %289 = vmatprep.subr.mxu0 0.0
    %290 = vmatpush1.msra.mxu0 %v278
    %291 = vmatprep.subr.mxu0 0.0
    %292 = vmatpush1.msra.mxu0 %v280
    %293 = vmatprep.subr.mxu0 0.0
    %294 = vmatpush1.msra.mxu0 0.0
    %295 = vmatprep.subr.mxu0 0.0
    %296 = vmatpush1.msra.mxu0 0.0
    %297 = vmatprep.subr.mxu0 0.0
    %298 = vmatpush1.msra.mxu0 0.0
    %299 = vmatprep.subr.mxu0 0.0
    %300 = vmatpush1.msra.mxu0 0.0
    %301 = vmatprep.subr.mxu0 0.0
    %302 = vmatpush1.msra.mxu0 0.0
    %303 = vmatprep.subr.mxu0 0.0
    %304 = vmatpush1.msra.mxu0 0.0
    %305 = vmatprep.subr.mxu0 0.0
    %306 = vmatpush1.msra.mxu0 0.0
    %307 = vmatprep.subr.mxu0 0.0
    %308 = vmatpush1.msra.mxu0 0.0
    %309 = vmatprep.subr.mxu0 0.0
    %310 = vmatpush1.msra.mxu0 0.0
    %311 = vmatprep.subr.mxu0 0.0
    %312 = vmatpush1.msra.mxu0 0.0
    %313 = vmatprep.subr.mxu0 0.0
    %314 = vmatpush1.msra.mxu0 0.0
    %315 = vmatprep.subr.mxu0 0.0
    %316 = vmatpush1.msra.mxu0 0.0
    %317 = vmatprep.subr.mxu0 0.0
    %318 = vmatpush1.msra.mxu0 0.0
    %319 = vmatprep.subr.mxu0 0.0
    %320 = vmatpush1.msra.mxu0 0.0
    %321 = vmatprep.subr.mxu0 0.0
    %322 = vmatpush1.msra.mxu0 0.0
    %323 = vmatprep.subr.mxu0 0.0
    %324 = vmatpush1.msra.mxu0 0.0
    %325 = vmatprep.subr.mxu0 0.0
    %326 = vmatpush1.msra.mxu0 0.0
    %327 = vmatprep.subr.mxu0 0.0
    %328 = vmatpush1.msra.mxu0 0.0
    %329 = vmatprep.subr.mxu0 0.0
    %330 = vmatpush1.msra.mxu0 0.0
    %331 = vmatprep.subr.mxu0 0.0
    %332 = vmatpush1.msra.mxu0 0.0
    %333 = vmatprep.subr.mxu0 0.0
    %334 = vmatpush1.msra.mxu0 0.0
    %335 = vmatprep.subr.mxu0 0.0
    %336 = vmatpush1.msra.mxu0 0.0
    %337 = vmatprep.subr.mxu0 0.0
    %338 = vmatpush1.msra.mxu0 0.0
    %339 = vmatprep.subr.mxu0 0.0
    %340 = vmatpush1.msra.mxu0 0.0
    %341 = vmatprep.subr.mxu0 0.0
    %342 = vmatpush1.msra.mxu0 0.0
    %343 = vmatprep.subr.mxu0 0.0
    %344 = vmatpush1.msra.mxu0 0.0
    %345 = vmatprep.subr.mxu0 0.0
    %346 = vmatpush1.msra.mxu0 0.0
    %347 = vmatprep.subr.mxu0 0.0
    %348 = vmatpush1.msra.mxu0 0.0
    %349 = vmatprep.subr.mxu0 0.0
    %350 = vmatpush1.msra.mxu0 0.0
    %351 = vmatprep.subr.mxu0 0.0
    %352 = vmatpush1.msra.mxu0 0.0
    %353 = vmatprep.mubr.f32.mxu0 0.0
    %354 = vmatmul.mubr.f32.gmra.mrb[0].mxu0 %v284
    %v355 = vpop.f32.mrb[0].mxu0
    %v356 = vadd.f32 0.0, %v355
    %v357 = vpop.f32.mrb[0].mxu0
    %358 = vmatprep.mubr.f32.mxu0 0.0
    %359 = vmatmul.mubr.f32.gmra.mrb[0].mxu0 %v287
    %v360 = vpop.f32.mrb[0].mxu0
    %v361 = vadd.f32 0.0, %v360
    %v362 = vpop.f32.mrb[0].mxu0
    %363 = vdwg.mxu0
    %364 = vrot.lane.b32.xlu0 %v156, 120
    %v365 = vpop.permute.xlu0 %364
    %366 = vrot.lane.b32.xlu0 %v161, 120
    %v367 = vpop.permute.xlu0 %366
    %368 = vrot.lane.b32.xlu0 %v156, 88
    %v369 = vpop.permute.xlu0 %368
    %370 = vrot.lane.b32.xlu0 %v161, 88
    %v371 = vpop.permute.xlu0 %370
    %v372 = vsel %vm170, %v365, 0
    %v374 = vsel %vm170, %v367, 0
    %v376 = vsel %vm170, %v369, 0
    %v378 = vsel %vm170, %v371, 0
    %380 = vmatprep.subr.mxu0 0.0
    %381 = vmatpush1.xpose.msra.mxu0 %v376
    %382 = vmatprep.subr.mxu0 0.0
    %383 = vmatpush1.xpose.msra.mxu0 %v378
    %384 = vmatprep.subr.mxu0 0.0
    %385 = vmatpush1.xpose.msra.mxu0 0.0
    %386 = vmatprep.subr.mxu0 0.0
    %387 = vmatpush1.xpose.msra.mxu0 0.0
    %388 = vmatprep.subr.mxu0 0.0
    %389 = vmatpush1.xpose.msra.mxu0 0.0
    %390 = vmatprep.subr.mxu0 0.0
    %391 = vmatpush1.xpose.msra.mxu0 0.0
    %392 = vmatprep.subr.mxu0 0.0
    %393 = vmatpush1.xpose.msra.mxu0 0.0
    %394 = vmatprep.subr.mxu0 0.0
    %395 = vmatpush1.xpose.msra.mxu0 0.0
    %396 = vmatprep.subr.mxu0 0.0
    %397 = vmatpush1.xpose.msra.mxu0 0.0
    %398 = vmatprep.subr.mxu0 0.0
    %399 = vmatpush1.xpose.msra.mxu0 0.0
    %400 = vmatprep.subr.mxu0 0.0
    %401 = vmatpush1.xpose.msra.mxu0 0.0
    %402 = vmatprep.subr.mxu0 0.0
    %403 = vmatpush1.xpose.msra.mxu0 0.0
    %404 = vmatprep.subr.mxu0 0.0
    %405 = vmatpush1.xpose.msra.mxu0 0.0
    %406 = vmatprep.subr.mxu0 0.0
    %407 = vmatpush1.xpose.msra.mxu0 0.0
    %408 = vmatprep.subr.mxu0 0.0
    %409 = vmatpush1.xpose.msra.mxu0 0.0
    %410 = vmatprep.subr.mxu0 0.0
    %411 = vmatpush1.xpose.msra.mxu0 0.0
    %412 = vmatprep.subr.mxu0 0.0
    %413 = vmatpush1.xpose.msra.mxu0 0.0
    %414 = vmatprep.subr.mxu0 0.0
    %415 = vmatpush1.xpose.msra.mxu0 0.0
    %416 = vmatprep.subr.mxu0 0.0
    %417 = vmatpush1.xpose.msra.mxu0 0.0
    %418 = vmatprep.subr.mxu0 0.0
    %419 = vmatpush1.xpose.msra.mxu0 0.0
    %420 = vmatprep.subr.mxu0 0.0
    %421 = vmatpush1.xpose.msra.mxu0 0.0
    %422 = vmatprep.subr.mxu0 0.0
    %423 = vmatpush1.xpose.msra.mxu0 0.0
    %424 = vmatprep.subr.mxu0 0.0
    %425 = vmatpush1.xpose.msra.mxu0 0.0
    %426 = vmatprep.subr.mxu0 0.0
    %427 = vmatpush1.xpose.msra.mxu0 0.0
    %428 = vmatprep.subr.mxu0 0.0
    %429 = vmatpush1.xpose.msra.mxu0 0.0
    %430 = vmatprep.subr.mxu0 0.0
    %431 = vmatpush1.xpose.msra.mxu0 0.0
    %432 = vmatprep.subr.mxu0 0.0
    %433 = vmatpush1.xpose.msra.mxu0 0.0
    %434 = vmatprep.subr.mxu0 0.0
    %435 = vmatpush1.xpose.msra.mxu0 0.0
    %436 = vmatprep.subr.mxu0 0.0
    %437 = vmatpush1.xpose.msra.mxu0 0.0
    %438 = vmatprep.subr.mxu0 0.0
    %439 = vmatpush1.xpose.msra.mxu0 0.0
    %440 = vmatprep.subr.mxu0 0.0
    %441 = vmatpush1.xpose.msra.mxu0 0.0
    %442 = vmatprep.subr.mxu0 0.0
    %443 = vmatpush1.xpose.msra.mxu0 0.0
    %444 = vmatprep.mubr.f32.mxu0 0.0
    %445 = vmatmul.mubr.f32.gmra.mrb[0].mxu0 %v372
    %v446 = vpop.f32.mrb[0].mxu0
    %v447 = vadd.f32 %v60, %v446
    %v448 = vpop.f32.mrb[0].mxu0
    %449 = vmatprep.mubr.f32.mxu0 0.0
    %450 = vmatmul.mubr.f32.gmra.mrb[0].mxu0 %v374
    %v451 = vpop.f32.mrb[0].mxu0
    %v452 = vadd.f32 %v61, %v451
    %v453 = vpop.f32.mrb[0].mxu0
    %454 = vdwg.mxu0
    %v455 = vsel %vm254, %v447, -inf
    %456 = vmax.xlane.f32.xlu0 %v455
    %v457 = vpop.xlane.xlu0 %456
    %v458 = vsel %vm254, %v452, -inf
    %459 = vmax.xlane.f32.xlu0 %v458
    %v460 = vpop.xlane.xlu0 %459
    %v461 = vsub.f32 %v447, %v457
    %v462 = vsub.f32 %v452, %v460
    %v463 = vmul.f32 %v461, 1.442695
    %v464 = vpow.pop %v463
    %v465 = vmul.f32 %v462, 1.442695
    %v466 = vpow.pop %v465
    %v467 = vsel %vm254, %v464, 0.0
    %468 = vadd.xlane.f32.xlu0 %v467
    %v469 = vpop.xlane.xlu0 %468
    %v470 = vsel %vm254, %v466, 0.0
    %471 = vadd.xlane.f32.xlu0 %v470
    %v472 = vpop.xlane.xlu0 %471
    %v473 = vrcp.pop %v469
    %v474 = vrcp.pop %v472
    %v475 = vmul.f32 %v464, %v473
    %v476 = vmul.f32 %v466, %v474
    %477 = vrot.lane.b32.xlu0 %v156, 56
    %v478 = vpop.permute.xlu0 %477
    %479 = vrot.lane.b32.xlu0 %v161, 56
    %v480 = vpop.permute.xlu0 %479
    %v484 = vsel %vm254, %v475, 0
    %v487 = vsel %vm254, %v476, 0
    %489 = vmatprep.subr.mxu0 0.0
    %490 = vmatpush1.msra.mxu0 %v478
    %491 = vmatprep.subr.mxu0 0.0
    %492 = vmatpush1.msra.mxu0 %v480
    %493 = vmatprep.subr.mxu0 0.0
    %494 = vmatpush1.msra.mxu0 0.0
    %495 = vmatprep.subr.mxu0 0.0
    %496 = vmatpush1.msra.mxu0 0.0
    %497 = vmatprep.subr.mxu0 0.0
    %498 = vmatpush1.msra.mxu0 0.0
    %499 = vmatprep.subr.mxu0 0.0
    %500 = vmatpush1.msra.mxu0 0.0
    %501 = vmatprep.subr.mxu0 0.0
    %502 = vmatpush1.msra.mxu0 0.0
    %503 = vmatprep.subr.mxu0 0.0
    %504 = vmatpush1.msra.mxu0 0.0
    %505 = vmatprep.subr.mxu0 0.0
    %506 = vmatpush1.msra.mxu0 0.0
    %507 = vmatprep.subr.mxu0 0.0
    %508 = vmatpush1.msra.mxu0 0.0
    %509 = vmatprep.subr.mxu0 0.0
    %510 = vmatpush1.msra.mxu0 0.0
    %511 = vmatprep.subr.mxu0 0.0
    %512 = vmatpush1.msra.mxu0 0.0
    %513 = vmatprep.subr.mxu0 0.0
    %514 = vmatpush1.msra.mxu0 0.0
    %515 = vmatprep.subr.mxu0 0.0
    %516 = vmatpush1.msra.mxu0 0.0
    %517 = vmatprep.subr.mxu0 0.0
    %518 = vmatpush1.msra.mxu0 0.0
    %519 = vmatprep.subr.mxu0 0.0
    %520 = vmatpush1.msra.mxu0 0.0
    %521 = vmatprep.subr.mxu0 0.0
    %522 = vmatpush1.msra.mxu0 0.0
    %523 = vmatprep.subr.mxu0 0.0
    %524 = vmatpush1.msra.mxu0 0.0
    %525 = vmatprep.subr.mxu0 0.0
    %526 = vmatpush1.msra.mxu0 0.0
    %527 = vmatprep.subr.mxu0 0.0
    %528 = vmatpush1.msra.mxu0 0.0
    %529 = vmatprep.subr.mxu0 0.0
    %530 = vmatpush1.msra.mxu0 0.0
    %531 = vmatprep.subr.mxu0 0.0
    %532 = vmatpush1.msra.mxu0 0.0
    %533 = vmatprep.subr.mxu0 0.0
    %534 = vmatpush1.msra.mxu0 0.0
    %535 = vmatprep.subr.mxu0 0.0
    %536 = vmatpush1.msra.mxu0 0.0
    %537 = vmatprep.subr.mxu0 0.0
    %538 = vmatpush1.msra.mxu0 0.0
    %539 = vmatprep.subr.mxu0 0.0
    %540 = vmatpush1.msra.mxu0 0.0
    %541 = vmatprep.subr.mxu0 0.0
    %542 = vmatpush1.msra.mxu0 0.0
    %543 = vmatprep.subr.mxu0 0.0
    %544 = vmatpush1.msra.mxu0 0.0
    %545 = vmatprep.subr.mxu0 0.0
    %546 = vmatpush1.msra.mxu0 0.0
    %547 = vmatprep.subr.mxu0 0.0
    %548 = vmatpush1.msra.mxu0 0.0
    %549 = vmatprep.subr.mxu0 0.0
    %550 = vmatpush1.msra.mxu0 0.0
    %551 = vmatprep.subr.mxu0 0.0
    %552 = vmatpush1.msra.mxu0 0.0
    %553 = vmatprep.mubr.f32.mxu0 0.0
    %554 = vmatmul.mubr.f32.gmra.mrb[0].mxu0 %v484
    %v555 = vpop.f32.mrb[0].mxu0
    %v556 = vadd.f32 0.0, %v555
    %v557 = vpop.f32.mrb[0].mxu0
    %558 = vmatprep.mubr.f32.mxu0 0.0
    %559 = vmatmul.mubr.f32.gmra.mrb[0].mxu0 %v487
    %v560 = vpop.f32.mrb[0].mxu0
    %v561 = vadd.f32 0.0, %v560
    %v562 = vpop.f32.mrb[0].mxu0
    %563 = vdwg.mxu0
    %564 = vrot.lane.b32.xlu0 %v156, 112
    %v565 = vpop.permute.xlu0 %564
    %566 = vrot.lane.b32.xlu0 %v161, 112
    %v567 = vpop.permute.xlu0 %566
    %568 = vrot.lane.b32.xlu0 %v156, 80
    %v569 = vpop.permute.xlu0 %568
    %570 = vrot.lane.b32.xlu0 %v161, 80
    %v571 = vpop.permute.xlu0 %570
    %v572 = vsel %vm170, %v565, 0
    %v574 = vsel %vm170, %v567, 0
    %v576 = vsel %vm170, %v569, 0
    %v578 = vsel %vm170, %v571, 0
    %580 = vmatprep.subr.mxu0 0.0
    %581 = vmatpush1.xpose.msra.mxu0 %v576
    %582 = vmatprep.subr.mxu0 0.0
    %583 = vmatpush1.xpose.msra.mxu0 %v578
    %584 = vmatprep.subr.mxu0 0.0
    %585 = vmatpush1.xpose.msra.mxu0 0.0
    %586 = vmatprep.subr.mxu0 0.0
    %587 = vmatpush1.xpose.msra.mxu0 0.0
    %588 = vmatprep.subr.mxu0 0.0
    %589 = vmatpush1.xpose.msra.mxu0 0.0
    %590 = vmatprep.subr.mxu0 0.0
    %591 = vmatpush1.xpose.msra.mxu0 0.0
    %592 = vmatprep.subr.mxu0 0.0
    %593 = vmatpush1.xpose.msra.mxu0 0.0
    %594 = vmatprep.subr.mxu0 0.0
    %595 = vmatpush1.xpose.msra.mxu0 0.0
    %596 = vmatprep.subr.mxu0 0.0
    %597 = vmatpush1.xpose.msra.mxu0 0.0
    %598 = vmatprep.subr.mxu0 0.0
    %599 = vmatpush1.xpose.msra.mxu0 0.0
    %600 = vmatprep.subr.mxu0 0.0
    %601 = vmatpush1.xpose.msra.mxu0 0.0
    %602 = vmatprep.subr.mxu0 0.0
    %603 = vmatpush1.xpose.msra.mxu0 0.0
    %604 = vmatprep.subr.mxu0 0.0
    %605 = vmatpush1.xpose.msra.mxu0 0.0
    %606 = vmatprep.subr.mxu0 0.0
    %607 = vmatpush1.xpose.msra.mxu0 0.0
    %608 = vmatprep.subr.mxu0 0.0
    %609 = vmatpush1.xpose.msra.mxu0 0.0
    %610 = vmatprep.subr.mxu0 0.0
    %611 = vmatpush1.xpose.msra.mxu0 0.0
    %612 = vmatprep.subr.mxu0 0.0
    %613 = vmatpush1.xpose.msra.mxu0 0.0
    %614 = vmatprep.subr.mxu0 0.0
    %615 = vmatpush1.xpose.msra.mxu0 0.0
    %616 = vmatprep.subr.mxu0 0.0
    %617 = vmatpush1.xpose.msra.mxu0 0.0
    %618 = vmatprep.subr.mxu0 0.0
    %619 = vmatpush1.xpose.msra.mxu0 0.0
    %620 = vmatprep.subr.mxu0 0.0
    %621 = vmatpush1.xpose.msra.mxu0 0.0
    %622 = vmatprep.subr.mxu0 0.0
    %623 = vmatpush1.xpose.msra.mxu0 0.0
    %624 = vmatprep.subr.mxu0 0.0
    %625 = vmatpush1.xpose.msra.mxu0 0.0
    %626 = vmatprep.subr.mxu0 0.0
    %627 = vmatpush1.xpose.msra.mxu0 0.0
    %628 = vmatprep.subr.mxu0 0.0
    %629 = vmatpush1.xpose.msra.mxu0 0.0
    %630 = vmatprep.subr.mxu0 0.0
    %631 = vmatpush1.xpose.msra.mxu0 0.0
    %632 = vmatprep.subr.mxu0 0.0
    %633 = vmatpush1.xpose.msra.mxu0 0.0
    %634 = vmatprep.subr.mxu0 0.0
    %635 = vmatpush1.xpose.msra.mxu0 0.0
    %636 = vmatprep.subr.mxu0 0.0
    %637 = vmatpush1.xpose.msra.mxu0 0.0
    %638 = vmatprep.subr.mxu0 0.0
    %639 = vmatpush1.xpose.msra.mxu0 0.0
    %640 = vmatprep.subr.mxu0 0.0
    %641 = vmatpush1.xpose.msra.mxu0 0.0
    %642 = vmatprep.subr.mxu0 0.0
    %643 = vmatpush1.xpose.msra.mxu0 0.0
    %644 = vmatprep.mubr.f32.mxu0 0.0
    %645 = vmatmul.mubr.f32.gmra.mrb[0].mxu0 %v572
    %v646 = vpop.f32.mrb[0].mxu0
    %v647 = vadd.f32 %v60, %v646
    %v648 = vpop.f32.mrb[0].mxu0
    %649 = vmatprep.mubr.f32.mxu0 0.0
    %650 = vmatmul.mubr.f32.gmra.mrb[0].mxu0 %v574
    %v651 = vpop.f32.mrb[0].mxu0
    %v652 = vadd.f32 %v61, %v651
    %v653 = vpop.f32.mrb[0].mxu0
    %654 = vdwg.mxu0
    %v655 = vsel %vm254, %v647, -inf
    %656 = vmax.xlane.f32.xlu0 %v655
    %v657 = vpop.xlane.xlu0 %656
    %v658 = vsel %vm254, %v652, -inf
    %659 = vmax.xlane.f32.xlu0 %v658
    %v660 = vpop.xlane.xlu0 %659
    %v661 = vsub.f32 %v647, %v657
    %v662 = vsub.f32 %v652, %v660
    %v663 = vmul.f32 %v661, 1.442695
    %v664 = vpow.pop %v663
    %v665 = vmul.f32 %v662, 1.442695
    %v666 = vpow.pop %v665
    %v667 = vsel %vm254, %v664, 0.0
    %668 = vadd.xlane.f32.xlu0 %v667
    %v669 = vpop.xlane.xlu0 %668
    %v670 = vsel %vm254, %v666, 0.0
    %671 = vadd.xlane.f32.xlu0 %v670
    %v672 = vpop.xlane.xlu0 %671
    %v673 = vrcp.pop %v669
    %v674 = vrcp.pop %v672
    %v675 = vmul.f32 %v664, %v673
    %v676 = vmul.f32 %v666, %v674
    %677 = vrot.lane.b32.xlu0 %v156, 48
    %v678 = vpop.permute.xlu0 %677
    %679 = vrot.lane.b32.xlu0 %v161, 48
    %v680 = vpop.permute.xlu0 %679
    %v684 = vsel %vm254, %v675, 0
    %v687 = vsel %vm254, %v676, 0
    %689 = vmatprep.subr.mxu0 0.0
    %690 = vmatpush1.msra.mxu0 %v678
    %691 = vmatprep.subr.mxu0 0.0
    %692 = vmatpush1.msra.mxu0 %v680
    %693 = vmatprep.subr.mxu0 0.0
    %694 = vmatpush1.msra.mxu0 0.0
    %695 = vmatprep.subr.mxu0 0.0
    %696 = vmatpush1.msra.mxu0 0.0
    %697 = vmatprep.subr.mxu0 0.0
    %698 = vmatpush1.msra.mxu0 0.0
    %699 = vmatprep.subr.mxu0 0.0
    %700 = vmatpush1.msra.mxu0 0.0
    %701 = vmatprep.subr.mxu0 0.0
    %702 = vmatpush1.msra.mxu0 0.0
    %703 = vmatprep.subr.mxu0 0.0
    %704 = vmatpush1.msra.mxu0 0.0
    %705 = vmatprep.subr.mxu0 0.0
    %706 = vmatpush1.msra.mxu0 0.0
    %707 = vmatprep.subr.mxu0 0.0
    %708 = vmatpush1.msra.mxu0 0.0
    %709 = vmatprep.subr.mxu0 0.0
    %710 = vmatpush1.msra.mxu0 0.0
    %711 = vmatprep.subr.mxu0 0.0
    %712 = vmatpush1.msra.mxu0 0.0
    %713 = vmatprep.subr.mxu0 0.0
    %714 = vmatpush1.msra.mxu0 0.0
    %715 = vmatprep.subr.mxu0 0.0
    %716 = vmatpush1.msra.mxu0 0.0
    %717 = vmatprep.subr.mxu0 0.0
    %718 = vmatpush1.msra.mxu0 0.0
    %719 = vmatprep.subr.mxu0 0.0
    %720 = vmatpush1.msra.mxu0 0.0
    %721 = vmatprep.subr.mxu0 0.0
    %722 = vmatpush1.msra.mxu0 0.0
    %723 = vmatprep.subr.mxu0 0.0
    %724 = vmatpush1.msra.mxu0 0.0
    %725 = vmatprep.subr.mxu0 0.0
    %726 = vmatpush1.msra.mxu0 0.0
    %727 = vmatprep.subr.mxu0 0.0
    %728 = vmatpush1.msra.mxu0 0.0
    %729 = vmatprep.subr.mxu0 0.0
    %730 = vmatpush1.msra.mxu0 0.0
    %731 = vmatprep.subr.mxu0 0.0
    %732 = vmatpush1.msra.mxu0 0.0
    %733 = vmatprep.subr.mxu0 0.0
    %734 = vmatpush1.msra.mxu0 0.0
    %735 = vmatprep.subr.mxu0 0.0
    %736 = vmatpush1.msra.mxu0 0.0
    %737 = vmatprep.subr.mxu0 0.0
    %738 = vmatpush1.msra.mxu0 0.0
    %739 = vmatprep.subr.mxu0 0.0
    %740 = vmatpush1.msra.mxu0 0.0
    %741 = vmatprep.subr.mxu0 0.0
    %742 = vmatpush1.msra.mxu0 0.0
    %743 = vmatprep.subr.mxu0 0.0
    %744 = vmatpush1.msra.mxu0 0.0
    %745 = vmatprep.subr.mxu0 0.0
    %746 = vmatpush1.msra.mxu0 0.0
    %747 = vmatprep.subr.mxu0 0.0
    %748 = vmatpush1.msra.mxu0 0.0
    %749 = vmatprep.subr.mxu0 0.0
    %750 = vmatpush1.msra.mxu0 0.0
    %751 = vmatprep.subr.mxu0 0.0
    %752 = vmatpush1.msra.mxu0 0.0
    %753 = vmatprep.mubr.f32.mxu0 0.0
    %754 = vmatmul.mubr.f32.gmra.mrb[0].mxu0 %v684
    %v755 = vpop.f32.mrb[0].mxu0
    %v756 = vadd.f32 0.0, %v755
    %v757 = vpop.f32.mrb[0].mxu0
    %758 = vmatprep.mubr.f32.mxu0 0.0
    %759 = vmatmul.mubr.f32.gmra.mrb[0].mxu0 %v687
    %v760 = vpop.f32.mrb[0].mxu0
    %v761 = vadd.f32 0.0, %v760
    %v762 = vpop.f32.mrb[0].mxu0
    %763 = vdwg.mxu0
    %764 = vrot.lane.b32.xlu0 %v156, 104
    %v765 = vpop.permute.xlu0 %764
    %766 = vrot.lane.b32.xlu0 %v161, 104
    %v767 = vpop.permute.xlu0 %766
    %768 = vrot.lane.b32.xlu0 %v156, 72
    %v769 = vpop.permute.xlu0 %768
    %770 = vrot.lane.b32.xlu0 %v161, 72
    %v771 = vpop.permute.xlu0 %770
    %v772 = vsel %vm170, %v765, 0
    %v774 = vsel %vm170, %v767, 0
    %v776 = vsel %vm170, %v769, 0
    %v778 = vsel %vm170, %v771, 0
    %780 = vmatprep.subr.mxu0 0.0
    %781 = vmatpush1.xpose.msra.mxu0 %v776
    %782 = vmatprep.subr.mxu0 0.0
    %783 = vmatpush1.xpose.msra.mxu0 %v778
    %784 = vmatprep.subr.mxu0 0.0
    %785 = vmatpush1.xpose.msra.mxu0 0.0
    %786 = vmatprep.subr.mxu0 0.0
    %787 = vmatpush1.xpose.msra.mxu0 0.0
    %788 = vmatprep.subr.mxu0 0.0
    %789 = vmatpush1.xpose.msra.mxu0 0.0
    %790 = vmatprep.subr.mxu0 0.0
    %791 = vmatpush1.xpose.msra.mxu0 0.0
    %792 = vmatprep.subr.mxu0 0.0
    %793 = vmatpush1.xpose.msra.mxu0 0.0
    %794 = vmatprep.subr.mxu0 0.0
    %795 = vmatpush1.xpose.msra.mxu0 0.0
    %796 = vmatprep.subr.mxu0 0.0
    %797 = vmatpush1.xpose.msra.mxu0 0.0
    %798 = vmatprep.subr.mxu0 0.0
    %799 = vmatpush1.xpose.msra.mxu0 0.0
    %800 = vmatprep.subr.mxu0 0.0
    %801 = vmatpush1.xpose.msra.mxu0 0.0
    %802 = vmatprep.subr.mxu0 0.0
    %803 = vmatpush1.xpose.msra.mxu0 0.0
    %804 = vmatprep.subr.mxu0 0.0
    %805 = vmatpush1.xpose.msra.mxu0 0.0
    %806 = vmatprep.subr.mxu0 0.0
    %807 = vmatpush1.xpose.msra.mxu0 0.0
    %808 = vmatprep.subr.mxu0 0.0
    %809 = vmatpush1.xpose.msra.mxu0 0.0
    %810 = vmatprep.subr.mxu0 0.0
    %811 = vmatpush1.xpose.msra.mxu0 0.0
    %812 = vmatprep.subr.mxu0 0.0
    %813 = vmatpush1.xpose.msra.mxu0 0.0
    %814 = vmatprep.subr.mxu0 0.0
    %815 = vmatpush1.xpose.msra.mxu0 0.0
    %816 = vmatprep.subr.mxu0 0.0
    %817 = vmatpush1.xpose.msra.mxu0 0.0
    %818 = vmatprep.subr.mxu0 0.0
    %819 = vmatpush1.xpose.msra.mxu0 0.0
    %820 = vmatprep.subr.mxu0 0.0
    %821 = vmatpush1.xpose.msra.mxu0 0.0
    %822 = vmatprep.subr.mxu0 0.0
    %823 = vmatpush1.xpose.msra.mxu0 0.0
    %824 = vmatprep.subr.mxu0 0.0
    %825 = vmatpush1.xpose.msra.mxu0 0.0
    %826 = vmatprep.subr.mxu0 0.0
    %827 = vmatpush1.xpose.msra.mxu0 0.0
    %828 = vmatprep.subr.mxu0 0.0
    %829 = vmatpush1.xpose.msra.mxu0 0.0
    %830 = vmatprep.subr.mxu0 0.0
    %831 = vmatpush1.xpose.msra.mxu0 0.0
    %832 = vmatprep.subr.mxu0 0.0
    %833 = vmatpush1.xpose.msra.mxu0 0.0
    %834 = vmatprep.subr.mxu0 0.0
    %835 = vmatpush1.xpose.msra.mxu0 0.0
    %836 = vmatprep.subr.mxu0 0.0
    %837 = vmatpush1.xpose.msra.mxu0 0.0
    %838 = vmatprep.subr.mxu0 0.0
    %839 = vmatpush1.xpose.msra.mxu0 0.0
    %840 = vmatprep.subr.mxu0 0.0
    %841 = vmatpush1.xpose.msra.mxu0 0.0
    %842 = vmatprep.subr.mxu0 0.0
    %843 = vmatpush1.xpose.msra.mxu0 0.0
    %844 = vmatprep.mubr.f32.mxu0 0.0
    %845 = vmatmul.mubr.f32.gmra.mrb[0].mxu0 %v772
    %v846 = vpop.f32.mrb[0].mxu0
    %v847 = vadd.f32 %v60, %v846
    %v848 = vpop.f32.mrb[0].mxu0
    %849 = vmatprep.mubr.f32.mxu0 0.0
    %850 = vmatmul.mubr.f32.gmra.mrb[0].mxu0 %v774
    %v851 = vpop.f32.mrb[0].mxu0
    %v852 = vadd.f32 %v61, %v851
    %v853 = vpop.f32.mrb[0].mxu0
    %854 = vdwg.mxu0
    %v855 = vsel %vm254, %v847, -inf
    %856 = vmax.xlane.f32.xlu0 %v855
    %v857 = vpop.xlane.xlu0 %856
    %v858 = vsel %vm254, %v852, -inf
    %859 = vmax.xlane.f32.xlu0 %v858
    %v860 = vpop.xlane.xlu0 %859
    %v861 = vsub.f32 %v847, %v857
    %v862 = vsub.f32 %v852, %v860
    %v863 = vmul.f32 %v861, 1.442695
    %v864 = vpow.pop %v863
    %v865 = vmul.f32 %v862, 1.442695
    %v866 = vpow.pop %v865
    %v867 = vsel %vm254, %v864, 0.0
    %868 = vadd.xlane.f32.xlu0 %v867
    %v869 = vpop.xlane.xlu0 %868
    %v870 = vsel %vm254, %v866, 0.0
    %871 = vadd.xlane.f32.xlu0 %v870
    %v872 = vpop.xlane.xlu0 %871
    %v873 = vrcp.pop %v869
    %v874 = vrcp.pop %v872
    %v875 = vmul.f32 %v864, %v873
    %v876 = vmul.f32 %v866, %v874
    %877 = vrot.lane.b32.xlu0 %v156, 40
    %v878 = vpop.permute.xlu0 %877
    %879 = vrot.lane.b32.xlu0 %v161, 40
    %v880 = vpop.permute.xlu0 %879
    %v884 = vsel %vm254, %v875, 0
    %v887 = vsel %vm254, %v876, 0
    %889 = vmatprep.subr.mxu0 0.0
    %890 = vmatpush1.msra.mxu0 %v878
    %891 = vmatprep.subr.mxu0 0.0
    %892 = vmatpush1.msra.mxu0 %v880
    %893 = vmatprep.subr.mxu0 0.0
    %894 = vmatpush1.msra.mxu0 0.0
    %895 = vmatprep.subr.mxu0 0.0
    %896 = vmatpush1.msra.mxu0 0.0
    %897 = vmatprep.subr.mxu0 0.0
    %898 = vmatpush1.msra.mxu0 0.0
    %899 = vmatprep.subr.mxu0 0.0
    %900 = vmatpush1.msra.mxu0 0.0
    %901 = vmatprep.subr.mxu0 0.0
    %902 = vmatpush1.msra.mxu0 0.0
    %903 = vmatprep.subr.mxu0 0.0
    %904 = vmatpush1.msra.mxu0 0.0
    %905 = vmatprep.subr.mxu0 0.0
    %906 = vmatpush1.msra.mxu0 0.0
    %907 = vmatprep.subr.mxu0 0.0
    %908 = vmatpush1.msra.mxu0 0.0
    %909 = vmatprep.subr.mxu0 0.0
    %910 = vmatpush1.msra.mxu0 0.0
    %911 = vmatprep.subr.mxu0 0.0
    %912 = vmatpush1.msra.mxu0 0.0
    %913 = vmatprep.subr.mxu0 0.0
    %914 = vmatpush1.msra.mxu0 0.0
    %915 = vmatprep.subr.mxu0 0.0
    %916 = vmatpush1.msra.mxu0 0.0
    %917 = vmatprep.subr.mxu0 0.0
    %918 = vmatpush1.msra.mxu0 0.0
    %919 = vmatprep.subr.mxu0 0.0
    %920 = vmatpush1.msra.mxu0 0.0
    %921 = vmatprep.subr.mxu0 0.0
    %922 = vmatpush1.msra.mxu0 0.0
    %923 = vmatprep.subr.mxu0 0.0
    %924 = vmatpush1.msra.mxu0 0.0
    %925 = vmatprep.subr.mxu0 0.0
    %926 = vmatpush1.msra.mxu0 0.0
    %927 = vmatprep.subr.mxu0 0.0
    %928 = vmatpush1.msra.mxu0 0.0
    %929 = vmatprep.subr.mxu0 0.0
    %930 = vmatpush1.msra.mxu0 0.0
    %931 = vmatprep.subr.mxu0 0.0
    %932 = vmatpush1.msra.mxu0 0.0
    %933 = vmatprep.subr.mxu0 0.0
    %934 = vmatpush1.msra.mxu0 0.0
    %935 = vmatprep.subr.mxu0 0.0
    %936 = vmatpush1.msra.mxu0 0.0
    %937 = vmatprep.subr.mxu0 0.0
    %938 = vmatpush1.msra.mxu0 0.0
    %939 = vmatprep.subr.mxu0 0.0
    %940 = vmatpush1.msra.mxu0 0.0
    %941 = vmatprep.subr.mxu0 0.0
    %942 = vmatpush1.msra.mxu0 0.0
    %943 = vmatprep.subr.mxu0 0.0
    %944 = vmatpush1.msra.mxu0 0.0
    %945 = vmatprep.subr.mxu0 0.0
    %946 = vmatpush1.msra.mxu0 0.0
    %947 = vmatprep.subr.mxu0 0.0
    %948 = vmatpush1.msra.mxu0 0.0
    %949 = vmatprep.subr.mxu0 0.0
    %950 = vmatpush1.msra.mxu0 0.0
    %951 = vmatprep.subr.mxu0 0.0
    %952 = vmatpush1.msra.mxu0 0.0
    %953 = vmatprep.mubr.f32.mxu0 0.0
    %954 = vmatmul.mubr.f32.gmra.mrb[0].mxu0 %v884
    %v955 = vpop.f32.mrb[0].mxu0
    %v956 = vadd.f32 0.0, %v955
    %v957 = vpop.f32.mrb[0].mxu0
    %958 = vmatprep.mubr.f32.mxu0 0.0
    %959 = vmatmul.mubr.f32.gmra.mrb[0].mxu0 %v887
    %v960 = vpop.f32.mrb[0].mxu0
    %v961 = vadd.f32 0.0, %v960
    %v962 = vpop.f32.mrb[0].mxu0
    %963 = vdwg.mxu0
    %966 = vrot.lane.b32.xlu0 %v556, 8
    %v967 = vpop.permute.xlu0 %966
    %968 = vrot.lane.b32.xlu0 %v561, 8
    %v969 = vpop.permute.xlu0 %968
    %974 = vrot.lane.b32.xlu0 %v756, 16
    %v975 = vpop.permute.xlu0 %974
    %976 = vrot.lane.b32.xlu0 %v761, 16
    %v977 = vpop.permute.xlu0 %976
    %982 = vrot.lane.b32.xlu0 %v956, 24
    %v983 = vpop.permute.xlu0 %982
    %984 = vrot.lane.b32.xlu0 %v961, 24
    %v985 = vpop.permute.xlu0 %984
    %v988 = vsel %vm170, %v356, %v967
    %v989 = vsel %vm170, %v361, %v969
    %v990 = vsel %vm254, %v988, %v975
    %v991 = vsel %vm254, %v989, %v977
    %vm992 = vcmask 195584
    %v993 = vsel %vm992, %v990, %v983
    %v994 = vsel %vm992, %v991, %v985
    %v995 = vlaneseq
    %v996 = vshrl.u32 %v995, 7
    %v997 = vsub.s32 0, %v996
    %v998 = vrot.slane %v72, %v997
    %1003 = vrot.lane.b32.xlu0 %v62, 32
    %v1004 = vpop.permute.xlu0 %1003
    %1005 = vrot.lane.b32.xlu0 %v63, 32
    %v1006 = vpop.permute.xlu0 %1005
    %1007 = vrot.lane.b32.xlu0 %v64, 32
    %v1008 = vpop.permute.xlu0 %1007
    %1009 = vrot.lane.b32.xlu0 %v65, 32
    %v1010 = vpop.permute.xlu0 %1009
    %v1016 = vsel %vm82, %v993, 0
    %v1019 = vsel %vm82, %v994, 0
    %1021 = vmatprep.subr.mxu0 0.0
    %1022 = vmatpush1.msra.mxu0 %v1004
    %1023 = vmatprep.subr.mxu0 0.0
    %1024 = vmatpush1.msra.mxu0 %v1006
    %1025 = vmatprep.subr.mxu0 0.0
    %1026 = vmatpush1.msra.mxu0 %v1008
    %1027 = vmatprep.subr.mxu0 0.0
    %1028 = vmatpush1.msra.mxu0 %v1010
    %1029 = vmatprep.subr.mxu0 0.0
    %1030 = vmatpush1.msra.mxu0 0.0
    %1031 = vmatprep.subr.mxu0 0.0
    %1032 = vmatpush1.msra.mxu0 0.0
    %1033 = vmatprep.subr.mxu0 0.0
    %1034 = vmatpush1.msra.mxu0 0.0
    %1035 = vmatprep.subr.mxu0 0.0
    %1036 = vmatpush1.msra.mxu0 0.0
    %1037 = vmatprep.subr.mxu0 0.0
    %1038 = vmatpush1.msra.mxu0 0.0
    %1039 = vmatprep.subr.mxu0 0.0
    %1040 = vmatpush1.msra.mxu0 0.0
    %1041 = vmatprep.subr.mxu0 0.0
    %1042 = vmatpush1.msra.mxu0 0.0
    %1043 = vmatprep.subr.mxu0 0.0
    %1044 = vmatpush1.msra.mxu0 0.0
    %1045 = vmatprep.subr.mxu0 0.0
    %1046 = vmatpush1.msra.mxu0 0.0
    %1047 = vmatprep.subr.mxu0 0.0
    %1048 = vmatpush1.msra.mxu0 0.0
    %1049 = vmatprep.subr.mxu0 0.0
    %1050 = vmatpush1.msra.mxu0 0.0
    %1051 = vmatprep.subr.mxu0 0.0
    %1052 = vmatpush1.msra.mxu0 0.0
    %1053 = vmatprep.subr.mxu0 0.0
    %1054 = vmatpush1.msra.mxu0 0.0
    %1055 = vmatprep.subr.mxu0 0.0
    %1056 = vmatpush1.msra.mxu0 0.0
    %1057 = vmatprep.subr.mxu0 0.0
    %1058 = vmatpush1.msra.mxu0 0.0
    %1059 = vmatprep.subr.mxu0 0.0
    %1060 = vmatpush1.msra.mxu0 0.0
    %1061 = vmatprep.subr.mxu0 0.0
    %1062 = vmatpush1.msra.mxu0 0.0
    %1063 = vmatprep.subr.mxu0 0.0
    %1064 = vmatpush1.msra.mxu0 0.0
    %1065 = vmatprep.subr.mxu0 0.0
    %1066 = vmatpush1.msra.mxu0 0.0
    %1067 = vmatprep.subr.mxu0 0.0
    %1068 = vmatpush1.msra.mxu0 0.0
    %1069 = vmatprep.subr.mxu0 0.0
    %1070 = vmatpush1.msra.mxu0 0.0
    %1071 = vmatprep.subr.mxu0 0.0
    %1072 = vmatpush1.msra.mxu0 0.0
    %1073 = vmatprep.subr.mxu0 0.0
    %1074 = vmatpush1.msra.mxu0 0.0
    %1075 = vmatprep.subr.mxu0 0.0
    %1076 = vmatpush1.msra.mxu0 0.0
    %1077 = vmatprep.subr.mxu0 0.0
    %1078 = vmatpush1.msra.mxu0 0.0
    %1079 = vmatprep.subr.mxu0 0.0
    %1080 = vmatpush1.msra.mxu0 0.0
    %1081 = vmatprep.subr.mxu0 0.0
    %1082 = vmatpush1.msra.mxu0 0.0
    %1083 = vmatprep.subr.mxu0 0.0
    %1084 = vmatpush1.msra.mxu0 0.0
    %1085 = vmatprep.mubr.f32.mxu0 0.0
    %1086 = vmatmul.mubr.f32.gmra.mrb[0].mxu0 %v1016
    %v1087 = vpop.f32.mrb[0].mxu0
    %v1088 = vadd.f32 %v998, %v1087
    %v1089 = vpop.f32.mrb[0].mxu0
    %1090 = vmatprep.mubr.f32.mxu0 0.0
    %1091 = vmatmul.mubr.f32.gmra.mrb[0].mxu0 %v1019
    %v1092 = vpop.f32.mrb[0].mxu0
    %v1093 = vadd.f32 %v998, %v1092
    %v1094 = vpop.f32.mrb[0].mxu0
    %1095 = vdwg.mxu0
    %v1096 = vadd.f32 %v15, %v1088
    %v1097 = vadd.f32 %v16, %v1093
    %v1098 = vsel %vm82, %v1096, 0.0
    %1099 = vadd.xlane.f32.xlu0 %v1098
    %v1100 = vpop.xlane.xlu0 %1099
    %v1101 = vsel %vm82, %v1097, 0.0
    %1102 = vadd.xlane.f32.xlu0 %v1101
    %v1103 = vpop.xlane.xlu0 %1102
    %v1104 = vrcp.pop 32.0
    %v1105 = vmul.f32 %v1100, %v1104
    %v1106 = vmul.f32 %v1103, %v1104
    %v1107 = vsub.f32 %v1096, %v1105
    %v1108 = vsub.f32 %v1097, %v1106
    %v1109 = vmul.f32 %v1107, %v1107
    %v1110 = vmul.f32 %v1108, %v1108
    %v1111 = vsel %vm82, %v1109, 0.0
    %1112 = vadd.xlane.f32.xlu0 %v1111
    %v1113 = vpop.xlane.xlu0 %1112
    %v1114 = vsel %vm82, %v1110, 0.0
    %1115 = vadd.xlane.f32.xlu0 %v1114
    %v1116 = vpop.xlane.xlu0 %1115
    %v1117 = vmul.f32 %v1113, %v1104
    %v1118 = vmul.f32 %v1116, %v1104
    %v1119 = vadd.f32 %v1117, 1e-05
    %v1120 = vadd.f32 %v1118, 1e-05
    %v1121 = vrsqrt.pop %v1119
    %v1122 = vrsqrt.pop %v1120
    %v1123 = vmul.f32 %v1107, %v1121
    %v1124 = vmul.f32 %v1108, %v1122
    %v1125 = vlaneseq
    %v1126 = vshrl.u32 %v1125, 7
    %v1127 = vsub.s32 0, %v1126
    %v1128 = vrot.slane %v73, %v1127
    %v1129 = vmul.f32 %v1123, %v1128
    %v1130 = vmul.f32 %v1124, %v1128
    %v1131 = vlaneseq
    %v1132 = vshrl.u32 %v1131, 7
    %v1133 = vsub.s32 0, %v1132
    %v1134 = vrot.slane %v74, %v1133
    %v1135 = vadd.f32 %v1129, %v1134
    %v1136 = vadd.f32 %v1130, %v1134
    %v1137 = vlaneseq
    %v1138 = vshrl.u32 %v1137, 7
    %v1139 = vsub.s32 0, %v1138
    %v1140 = vrot.slane %v71, %v1139
    %v1142 = vsel %vm82, %v1135, 0
    %v1145 = vsel %vm82, %v1136, 0
    %1147 = vmatprep.subr.mxu0 0.0
    %1148 = vmatpush1.msra.mxu0 %v66
    %1149 = vmatprep.subr.mxu0 0.0
    %1150 = vmatpush1.msra.mxu0 %v67
    %1151 = vmatprep.subr.mxu0 0.0
    %1152 = vmatpush1.msra.mxu0 %v68
    %1153 = vmatprep.subr.mxu0 0.0
    %1154 = vmatpush1.msra.mxu0 %v69
    %1155 = vmatprep.subr.mxu0 0.0
    %1156 = vmatpush1.msra.mxu0 0.0
    %1157 = vmatprep.subr.mxu0 0.0
    %1158 = vmatpush1.msra.mxu0 0.0
    %1159 = vmatprep.subr.mxu0 0.0
    %1160 = vmatpush1.msra.mxu0 0.0
    %1161 = vmatprep.subr.mxu0 0.0
    %1162 = vmatpush1.msra.mxu0 0.0
    %1163 = vmatprep.subr.mxu0 0.0
    %1164 = vmatpush1.msra.mxu0 0.0
    %1165 = vmatprep.subr.mxu0 0.0
    %1166 = vmatpush1.msra.mxu0 0.0
    %1167 = vmatprep.subr.mxu0 0.0
    %1168 = vmatpush1.msra.mxu0 0.0
    %1169 = vmatprep.subr.mxu0 0.0
    %1170 = vmatpush1.msra.mxu0 0.0
    %1171 = vmatprep.subr.mxu0 0.0
    %1172 = vmatpush1.msra.mxu0 0.0
    %1173 = vmatprep.subr.mxu0 0.0
    %1174 = vmatpush1.msra.mxu0 0.0
    %1175 = vmatprep.subr.mxu0 0.0
    %1176 = vmatpush1.msra.mxu0 0.0
    %1177 = vmatprep.subr.mxu0 0.0
    %1178 = vmatpush1.msra.mxu0 0.0
    %1179 = vmatprep.subr.mxu0 0.0
    %1180 = vmatpush1.msra.mxu0 0.0
    %1181 = vmatprep.subr.mxu0 0.0
    %1182 = vmatpush1.msra.mxu0 0.0
    %1183 = vmatprep.subr.mxu0 0.0
    %1184 = vmatpush1.msra.mxu0 0.0
    %1185 = vmatprep.subr.mxu0 0.0
    %1186 = vmatpush1.msra.mxu0 0.0
    %1187 = vmatprep.subr.mxu0 0.0
    %1188 = vmatpush1.msra.mxu0 0.0
    %1189 = vmatprep.subr.mxu0 0.0
    %1190 = vmatpush1.msra.mxu0 0.0
    %1191 = vmatprep.subr.mxu0 0.0
    %1192 = vmatpush1.msra.mxu0 0.0
    %1193 = vmatprep.subr.mxu0 0.0
    %1194 = vmatpush1.msra.mxu0 0.0
    %1195 = vmatprep.subr.mxu0 0.0
    %1196 = vmatpush1.msra.mxu0 0.0
    %1197 = vmatprep.subr.mxu0 0.0
    %1198 = vmatpush1.msra.mxu0 0.0
    %1199 = vmatprep.subr.mxu0 0.0
    %1200 = vmatpush1.msra.mxu0 0.0
    %1201 = vmatprep.subr.mxu0 0.0
    %1202 = vmatpush1.msra.mxu0 0.0
    %1203 = vmatprep.subr.mxu0 0.0
    %1204 = vmatpush1.msra.mxu0 0.0
    %1205 = vmatprep.subr.mxu0 0.0
    %1206 = vmatpush1.msra.mxu0 0.0
    %1207 = vmatprep.subr.mxu0 0.0
    %1208 = vmatpush1.msra.mxu0 0.0
    %1209 = vmatprep.subr.mxu0 0.0
    %1210 = vmatpush1.msra.mxu0 0.0
    %1211 = vmatprep.mubr.f32.mxu0 0.0
    %1212 = vmatmul.mubr.f32.gmra.mrb[0].mxu0 %v1142
    %v1213 = vpop.f32.mrb[0].mxu0
    %v1214 = vadd.f32 %v1140, %v1213
    %v1215 = vpop.f32.mrb[0].mxu0
    %1216 = vmatprep.mubr.f32.mxu0 0.0
    %1217 = vmatmul.mubr.f32.gmra.mrb[0].mxu0 %v1145
    %v1218 = vpop.f32.mrb[0].mxu0
    %v1219 = vadd.f32 %v1140, %v1218
    %v1220 = vpop.f32.mrb[0].mxu0
    %1221 = vdwg.mxu0
    %v1222 = vmax.f32 %v1214, 0.0
    %v1223 = vmax.f32 %v1219, 0.0
    %v1224 = vlaneseq
    %v1225 = vshrl.u32 %v1224, 7
    %v1226 = vsub.s32 0, %v1225
    %v1227 = vrot.slane %v75, %v1226
    %1232 = vrot.lane.b32.xlu0 %v66, 64
    %v1233 = vpop.permute.xlu0 %1232
    %1234 = vrot.lane.b32.xlu0 %v67, 64
    %v1235 = vpop.permute.xlu0 %1234
    %1236 = vrot.lane.b32.xlu0 %v68, 64
    %v1237 = vpop.permute.xlu0 %1236
    %1238 = vrot.lane.b32.xlu0 %v69, 64
    %v1239 = vpop.permute.xlu0 %1238
    %vm1240 = vcmask 523264
    %v1242 = vsel %vm1240, %v1222, 0
    %v1245 = vsel %vm1240, %v1223, 0
    %v1247 = vsel %vm1240, %v1233, 0
    %v1249 = vsel %vm1240, %v1235, 0
    %v1251 = vsel %vm1240, %v1237, 0
    %v1253 = vsel %vm1240, %v1239, 0
    %1255 = vmatprep.subr.mxu0 0.0
    %1256 = vmatpush1.xpose.msra.mxu0 %v1247
    %1257 = vmatprep.subr.mxu0 0.0
    %1258 = vmatpush1.xpose.msra.mxu0 %v1249
    %1259 = vmatprep.subr.mxu0 0.0
    %1260 = vmatpush1.xpose.msra.mxu0 %v1251
    %1261 = vmatprep.subr.mxu0 0.0
    %1262 = vmatpush1.xpose.msra.mxu0 %v1253
    %1263 = vmatprep.subr.mxu0 0.0
    %1264 = vmatpush1.xpose.msra.mxu0 0.0
    %1265 = vmatprep.subr.mxu0 0.0
    %1266 = vmatpush1.xpose.msra.mxu0 0.0
    %1267 = vmatprep.subr.mxu0 0.0
    %1268 = vmatpush1.xpose.msra.mxu0 0.0
    %1269 = vmatprep.subr.mxu0 0.0
    %1270 = vmatpush1.xpose.msra.mxu0 0.0
    %1271 = vmatprep.subr.mxu0 0.0
    %1272 = vmatpush1.xpose.msra.mxu0 0.0
    %1273 = vmatprep.subr.mxu0 0.0
    %1274 = vmatpush1.xpose.msra.mxu0 0.0
    %1275 = vmatprep.subr.mxu0 0.0
    %1276 = vmatpush1.xpose.msra.mxu0 0.0
    %1277 = vmatprep.subr.mxu0 0.0
    %1278 = vmatpush1.xpose.msra.mxu0 0.0
    %1279 = vmatprep.subr.mxu0 0.0
    %1280 = vmatpush1.xpose.msra.mxu0 0.0
    %1281 = vmatprep.subr.mxu0 0.0
    %1282 = vmatpush1.xpose.msra.mxu0 0.0
    %1283 = vmatprep.subr.mxu0 0.0
    %1284 = vmatpush1.xpose.msra.mxu0 0.0
    %1285 = vmatprep.subr.mxu0 0.0
    %1286 = vmatpush1.xpose.msra.mxu0 0.0
    %1287 = vmatprep.subr.mxu0 0.0
    %1288 = vmatpush1.xpose.msra.mxu0 0.0
    %1289 = vmatprep.subr.mxu0 0.0
    %1290 = vmatpush1.xpose.msra.mxu0 0.0
    %1291 = vmatprep.subr.mxu0 0.0
    %1292 = vmatpush1.xpose.msra.mxu0 0.0
    %1293 = vmatprep.subr.mxu0 0.0
    %1294 = vmatpush1.xpose.msra.mxu0 0.0
    %1295 = vmatprep.subr.mxu0 0.0
    %1296 = vmatpush1.xpose.msra.mxu0 0.0
    %1297 = vmatprep.subr.mxu0 0.0
    %1298 = vmatpush1.xpose.msra.mxu0 0.0
    %1299 = vmatprep.subr.mxu0 0.0
    %1300 = vmatpush1.xpose.msra.mxu0 0.0
    %1301 = vmatprep.subr.mxu0 0.0
    %1302 = vmatpush1.xpose.msra.mxu0 0.0
    %1303 = vmatprep.subr.mxu0 0.0
    %1304 = vmatpush1.xpose.msra.mxu0 0.0
    %1305 = vmatprep.subr.mxu0 0.0
    %1306 = vmatpush1.xpose.msra.mxu0 0.0
    %1307 = vmatprep.subr.mxu0 0.0
    %1308 = vmatpush1.xpose.msra.mxu0 0.0
    %1309 = vmatprep.subr.mxu0 0.0
    %1310 = vmatpush1.xpose.msra.mxu0 0.0
    %1311 = vmatprep.subr.mxu0 0.0
    %1312 = vmatpush1.xpose.msra.mxu0 0.0
    %1313 = vmatprep.subr.mxu0 0.0
    %1314 = vmatpush1.xpose.msra.mxu0 0.0
    %1315 = vmatprep.subr.mxu0 0.0
    %1316 = vmatpush1.xpose.msra.mxu0 0.0
    %1317 = vmatprep.subr.mxu0 0.0
    %1318 = vmatpush1.xpose.msra.mxu0 0.0
    %1319 = vmatprep.mubr.f32.mxu0 0.0
    %1320 = vmatmul.mubr.f32.gmra.mrb[0].mxu0 %v1242
    %v1321 = vpop.f32.mrb[0].mxu0
    %v1322 = vadd.f32 %v1227, %v1321
    %v1323 = vpop.f32.mrb[0].mxu0
    %1324 = vmatprep.mubr.f32.mxu0 0.0
    %1325 = vmatmul.mubr.f32.gmra.mrb[0].mxu0 %v1245
    %v1326 = vpop.f32.mrb[0].mxu0
    %v1327 = vadd.f32 %v1227, %v1326
    %v1328 = vpop.f32.mrb[0].mxu0
    %1329 = vdwg.mxu0
    %v1330 = vadd.f32 %v1135, %v1322
    %v1331 = vadd.f32 %v1136, %v1327
    %v1332 = vsel %vm82, %v1330, 0.0
    %1333 = vadd.xlane.f32.xlu0 %v1332
    %v1334 = vpop.xlane.xlu0 %1333
    %v1335 = vsel %vm82, %v1331, 0.0
    %1336 = vadd.xlane.f32.xlu0 %v1335
    %v1337 = vpop.xlane.xlu0 %1336
    %v1338 = vmul.f32 %v1334, %v1104
    %v1339 = vmul.f32 %v1337, %v1104
    %v1340 = vsub.f32 %v1330, %v1338
    %v1341 = vsub.f32 %v1331, %v1339
    %v1342 = vmul.f32 %v1340, %v1340
    %v1343 = vmul.f32 %v1341, %v1341
    %v1344 = vsel %vm82, %v1342, 0.0
    %1345 = vadd.xlane.f32.xlu0 %v1344
    %v1346 = vpop.xlane.xlu0 %1345
    %v1347 = vsel %vm82, %v1343, 0.0
    %1348 = vadd.xlane.f32.xlu0 %v1347
    %v1349 = vpop.xlane.xlu0 %1348
    %v1350 = vmul.f32 %v1346, %v1104
    %v1351 = vmul.f32 %v1349, %v1104
    %v1352 = vadd.f32 %v1350, 1e-05
    %v1353 = vadd.f32 %v1351, 1e-05
    %v1354 = vrsqrt.pop %v1352
    %v1355 = vrsqrt.pop %v1353
    %v1356 = vmul.f32 %v1340, %v1354
    %v1357 = vmul.f32 %v1341, %v1355
    %v1358 = vlaneseq
    %v1359 = vshrl.u32 %v1358, 7
    %v1360 = vsub.s32 0, %v1359
    %v1361 = vrot.slane %v76, %v1360
    %v1362 = vmul.f32 %v1356, %v1361
    %v1363 = vmul.f32 %v1357, %v1361
    %v1364 = vlaneseq
    %v1365 = vshrl.u32 %v1364, 7
    %v1366 = vsub.s32 0, %v1365
    %v1367 = vrot.slane %v77, %v1366
    %v1368 = vadd.f32 %v1362, %v1367
    %v1369 = vadd.f32 %v1363, %v1367
    %1370 = vst.msk [vmem:[#allocation2] sm:$0xff] %vm82, %v1368
    %1371 = vst.msk [vmem:[#allocation2 + $0x8] sm:$0xff] %vm82, %v1369
    // Predicated region
    $region14: #{transformer_encoder_layer.1} parent=1 // pred_check
      _
    $region15: #{transformer_encoder_layer.1} parent=1 // pred_check_branch
      %1373 = sbr.rel (0) target = $region17
    $region16: #{transformer_encoder_layer.1} parent=1 // pred_region
      %s1375 = ssub.s32 256, 256
      %1376 = vsyncadd [#allocation3], %s1375
      %s1377 = sshll.u32 [#allocation2], 4
      %s1378 = int_to_ptr.vmem [resolvable:$true] %s1377
      %1383 = dma.vmem_to_hbm [thread:$0]  %s1378, 256, %s3, [#allocation3], 128, 128, 8
    $region17: #{transformer_encoder_layer.1} parent=1 // pred_fallthru
      _
    // Predicated region
    $region18: #{transformer_encoder_layer.1} parent=1 // pred_check
      _
    $region19: #{transformer_encoder_layer.1} parent=1 // pred_check_branch
      %1385 = sbr.rel (0) target = $region21
    $region20: #{transformer_encoder_layer.1} parent=1 // pred_region
      %1386 = dma.done [#allocation3], 256
    $region21: #{transformer_encoder_layer.1} parent=1 // pred_fallthru
      _
    %1387 = vsyncpa [#allocation3], 1

</llo_original>
